<compile_context>
chip_gen: v5e
topology: v5e:2x2
jax: 0.10.0
libtpu: 0.0.40
codegen_flags: <defaults>
</compile_context>

<pallas_src>
import functools

import jax
import jax.numpy as jnp
from jax import lax
from jax.experimental import pallas as pl
from jax.experimental.pallas import tpu as pltpu

BN_EPS = 1e-5


# ----------------------------------------------------------------------------
# Shared per-band convolution (one wide MXU matmul + roll-based kw combine)
# ----------------------------------------------------------------------------
def _conv_band(x_ref, w_ref, *, TH, W, Wpp, Cin, Cout, KH, KW):
    """Conv2d(KHxKW, stride 1, 'same') for one (batch, row-band) tile.

    x_ref : (1, 1, (TH+KH-1)*Wpp, Cin) bf16 — halo-duplicated, zero-padded band
            flattened over (rows, padded W) so kh slabs are aligned static
            sublane slices (Wpp is a multiple of 8).
    w_ref : (KH*Cin, KW*Cout) bf16 — kh folded into the contraction (K),
            kw folded into the MXU width (N).
    returns (TH, W, Cout) f32.
    """
    M = TH * Wpp

    # kh-folded patch: column kh*Cin + c holds x_pad[band_row + kh, w, c].
    slabs = [x_ref[0, 0, pl.ds(kh * Wpp, M), :] for kh in range(KH)]
    wide = jnp.concatenate(slabs, axis=-1)                   # (M, KH*Cin) bf16

    # Single wide matmul: N = KW*Cout lanes.
    z = jnp.dot(wide, w_ref[...],
                preferred_element_type=jnp.float32)          # (M, KW*Cout) f32

    # kw combine: out[m] = sum_kw z[m + kw, kw*Cout:(kw+1)*Cout].
    # Roll (XLU) instead of sublane-offset slices; wraparound only lands in the
    # cropped halo columns (w >= W) because W-1 + KW-1 < Wpp.
    acc = z[:, 0:Cout]
    for kw in range(1, KW):
        slab = z[:, kw * Cout:(kw + 1) * Cout]               # (M, Cout)
        acc = acc + pltpu.roll(slab, shift=M - kw, axis=0)   # slab[m + kw]

    # Crop halo columns once (layout-preserving: Wpp, W multiples of 8).
    return acc.reshape(TH, Wpp, Cout)[:, :W, :]


# ----------------------------------------------------------------------------
# Pass 1: conv + partial BN statistics (no conv output written to HBM)
# ----------------------------------------------------------------------------
def _conv_stats_kernel(x_ref, w_ref, stats_ref, *,
                       TH, W, Wpp, Cin, Cout, KH, KW):
    y = _conv_band(x_ref, w_ref, TH=TH, W=W, Wpp=Wpp,
                   Cin=Cin, Cout=Cout, KH=KH, KW=KW)          # (TH, W, Cout) f32
    y2 = y.reshape(TH * W, Cout)
    s = jnp.sum(y2, axis=0, keepdims=True)                    # (1, Cout)
    sq = jnp.sum(y2 * y2, axis=0, keepdims=True)              # (1, Cout)
    stats_ref[...] = jnp.concatenate([s, sq], axis=0).reshape(1, 1, 2, Cout)


# ----------------------------------------------------------------------------
# Pass 2: conv recomputed + BN affine + ReLU + AvgPool2d(2, 2)
# ----------------------------------------------------------------------------
def _conv_bn_pool_kernel(x_ref, w_ref, scale_ref, shift_ref, o_ref, sc_ref, *,
                         TH, W, Wpp, Cin, Cout, KH, KW):
    y = _conv_band(x_ref, w_ref, TH=TH, W=W, Wpp=Wpp,
                   Cin=Cin, Cout=Cout, KH=KH, KW=KW)          # (TH, W, Cout) f32

    # Fused BN affine + ReLU (f32 elementwise).
    z = jnp.maximum(y * scale_ref[...] + shift_ref[...], 0.0)

    # H pooling: split the major dim (layout-preserving) and add the halves.
    z = z.reshape(TH // 2, 2, W, Cout)
    zh = z[:, 0, :, :] + z[:, 1, :, :]                        # (TH//2, W, Cout)

    # W pooling: even/odd deinterleave via stride-2 reads of a small VMEM
    # scratch (conv output no longer round-trips HBM, so this stays in-VMEM).
    sc_ref[...] = zh.reshape((TH // 2) * W, Cout)
    half = (TH // 2) * (W // 2)
    even = sc_ref[pl.ds(0, half, 2), :]
    odd = sc_ref[pl.ds(1, half, 2), :]
    pooled = (even + odd) * 0.25                              # (half, Cout)

    o_ref[...] = pooled.reshape(1, TH // 2, W // 2, Cout).astype(o_ref.dtype)


# ----------------------------------------------------------------------------
# Wrapper
# ----------------------------------------------------------------------------
def _pick_band_height(H, Wpp):
    """Largest even divisor of H with th*Wpp <= 1024 (fallback: 2)."""
    for cand in range(H, 1, -1):
        if cand % 2 == 0 and H % cand == 0 and cand * Wpp <= 1024:
            return cand
    return 2


def _downblock_pallas(x_nchw, conv_w_hwio, bn_gamma, bn_beta, *, th=None,
                      eps=BN_EPS):
    B, Cin, H, W = x_nchw.shape
    KH, KW, _, Cout = conv_w_hwio.shape
    assert KH == KW and KH % 2 == 1
    assert H % 2 == 0 and W % 2 == 0

    ph, pw = KH // 2, KW // 2
    Wpp = ((W + 2 * pw + 7) // 8) * 8        # pad width so row slabs stay aligned
    assert Wpp % 8 == 0, "row slabs must stay sublane-aligned"
    # Roll-based kw combine requires its wraparound to land only in cropped
    # halo columns: W-1 + (KW-1) must be < Wpp.
    assert W + KW - 2 < Wpp

    if th is None:
        th = _pick_band_height(H, Wpp)
    assert H % th == 0 and th % 2 == 0
    nb = H // th
    THp = th + KH - 1                         # band rows incl. duplicated halo

    # NCHW -> NHWC, zero-pad halo (+ right pad to Wpp), split into
    # halo-duplicated row bands, flatten (rows, padded W), cast to bf16.
    x = jnp.transpose(x_nchw, (0, 2, 3, 1))
    x_pad = jnp.pad(x, ((0, 0), (ph, ph), (pw, Wpp - W - pw), (0, 0)))
    x_bands = jnp.stack(
        [x_pad[:, r * th: r * th + THp] for r in range(nb)], axis=1)
    x_bands = x_bands.reshape(B, nb, THp * Wpp, Cin).astype(jnp.bfloat16)

    # HWIO -> (KH*Cin, KW*Cout): kh in the contraction dim, kw in the MXU width.
    w_fold = jnp.transpose(conv_w_hwio, (0, 2, 1, 3)).reshape(KH * Cin, KW * Cout)
    w_fold = w_fold.astype(jnp.bfloat16)

    # ---- pass 1: conv + per-band partial BN statistics --------------------
    kern1 = functools.partial(_conv_stats_kernel, TH=th, W=W, Wpp=Wpp,
                              Cin=Cin, Cout=Cout, KH=KH, KW=KW)
    stats = pl.pallas_call(
        kern1,
        out_shape=jax.ShapeDtypeStruct((B, nb, 2, Cout), jnp.float32),
        grid_spec=pltpu.PrefetchScalarGridSpec(
            num_scalar_prefetch=0,
            grid=(B, nb),
            in_specs=[
                pl.BlockSpec((1, 1, THp * Wpp, Cin), lambda b, r: (b, r, 0, 0)),
                pl.BlockSpec((KH * Cin, KW * Cout), lambda b, r: (0, 0)),
            ],
            out_specs=pl.BlockSpec((1, 1, 2, Cout), lambda b, r: (b, r, 0, 0)),
        ),
        compiler_params=pltpu.CompilerParams(
            dimension_semantics=("parallel", "parallel"),
            vmem_limit_bytes=32 * 1024 * 1024),
    )(x_bands, w_fold)

    # Combine band-partial statistics -> per-channel BN scale/shift (tiny XLA
    # op; batch-stat BN needs a global barrier between the two Pallas passes).
    # TODO(synk): single-pass E[x^2]-mean^2 in f32 is cancellation-prone for
    # large-mean activations; a centered second pass would be more robust.
    n = jnp.float32(B * H * W)
    tot = jnp.sum(stats, axis=(0, 1))                        # (2, Cout)
    mean = tot[0] / n
    var = jnp.maximum(tot[1] / n - mean * mean, 0.0)         # biased (training)
    inv = lax.rsqrt(var + eps)
    scale = (bn_gamma * inv).astype(jnp.float32).reshape(1, Cout)
    shift = (bn_beta - mean * bn_gamma * inv).astype(jnp.float32).reshape(1, Cout)

    # ---- pass 2: conv recompute + BN + ReLU + pool -------------------------
    kern2 = functools.partial(_conv_bn_pool_kernel, TH=th, W=W, Wpp=Wpp,
                              Cin=Cin, Cout=Cout, KH=KH, KW=KW)
    out = pl.pallas_call(
        kern2,
        out_shape=jax.ShapeDtypeStruct((B, H // 2, W // 2, Cout), x_nchw.dtype),
        grid_spec=pltpu.PrefetchScalarGridSpec(
            num_scalar_prefetch=0,
            grid=(B, nb),
            in_specs=[
                pl.BlockSpec((1, 1, THp * Wpp, Cin), lambda b, r: (b, r, 0, 0)),
                pl.BlockSpec((KH * Cin, KW * Cout), lambda b, r: (0, 0)),
                pl.BlockSpec((1, Cout), lambda b, r: (0, 0)),
                pl.BlockSpec((1, Cout), lambda b, r: (0, 0)),
            ],
            out_specs=pl.BlockSpec((1, th // 2, W // 2, Cout),
                                   lambda b, r: (b, r, 0, 0)),
            scratch_shapes=[pltpu.VMEM(((th // 2) * W, Cout), jnp.float32)],
        ),
        compiler_params=pltpu.CompilerParams(
            dimension_semantics=("parallel", "parallel"),
            vmem_limit_bytes=32 * 1024 * 1024),
    )(x_bands, w_fold, scale, shift)

    return jnp.transpose(out, (0, 3, 1, 2))                  # back to NCHW


@functools.partial(jax.jit, static_argnames=("th",))
def downblock2d_forward(x_nchw, params, th=None):
    # TODO(synk): grouped convolution (groups > 1) is not implemented; the
    # module default groups=1 is assumed.
    # Note: the conv bias is kept in `params` for fidelity but intentionally not
    # applied: a per-channel constant before training-mode BatchNorm is exactly
    # cancelled by the mean subtraction (would need re-applying for eval-mode
    # running-stat BN).
    return _downblock_pallas(x_nchw, params["conv_w"], params["bn_gamma"],
                             params["bn_beta"], th=th)


# ----------------------------------------------------------------------------
# Parameter init + pure-JAX reference (same bf16-input matmul precision)
# ----------------------------------------------------------------------------
def init_downblock_params(key, in_features, out_features, kernel_size=3):
    kw_, kb_, kg_, kbt_ = jax.random.split(key, 4)
    fan_in = in_features * kernel_size * kernel_size
    w = jax.random.normal(
        kw_, (kernel_size, kernel_size, in_features, out_features), jnp.float32)
    w = w / jnp.sqrt(jnp.float32(fan_in))
    return dict(
        conv_w=w,
        conv_b=0.01 * jax.random.normal(kb_, (out_features,), jnp.float32),
        bn_gamma=1.0 + 0.1 * jax.random.normal(kg_, (out_features,), jnp.float32),
        bn_beta=0.1 * jax.random.normal(kbt_, (out_features,), jnp.float32),
    )


def _reference_downblock(x_nchw, params, eps=BN_EPS):
    x = jnp.transpose(x_nchw, (0, 2, 3, 1)).astype(jnp.bfloat16)
    w = params["conv_w"].astype(jnp.bfloat16)
    y = lax.conv_general_dilated(
        x, w, window_strides=(1, 1), padding=((1, 1), (1, 1)),
        dimension_numbers=("NHWC", "HWIO", "NHWC"),
        preferred_element_type=jnp.float32)
    # conv bias omitted: exactly cancelled by training-mode BN mean subtraction.
    mean = jnp.mean(y, axis=(0, 1, 2))
    var = jnp.mean(jnp.square(y - mean), axis=(0, 1, 2))
    z = (y - mean) * lax.rsqrt(var + eps) * params["bn_gamma"] + params["bn_beta"]
    z = jnp.maximum(z, 0.0)
    B, H, W, C = z.shape
    p = z.reshape(B, H // 2, 2, W // 2, 2, C).mean(axis=(2, 4))
    return jnp.transpose(p, (0, 3, 1, 2))


# ----------------------------------------------------------------------------
if __name__ == "__main__":
    B, Cin, Cout, H, W = 2, 32, 64, 16, 16

    key = jax.random.PRNGKey(0)
    key, kx, kp = jax.random.split(key, 3)
    x = jax.random.normal(kx, (B, Cin, H, W), jnp.float32)
    params = init_downblock_params(kp, Cin, Cout)

    out = downblock2d_forward(x, params)
    jax.block_until_ready(out)
    assert out.shape == (B, Cout, H // 2, W // 2), out.shape
    assert bool(jnp.all(jnp.isfinite(out)))

    ref = _reference_downblock(x, params)
    err = float(jnp.max(jnp.abs(out - ref)))
    assert err < 2e-3, err

    print("KERNEL_OK")
</pallas_src>

<mosaic_0001>
module attributes {stable_mosaic.version = 11 : i64} {
  func.func @_conv_stats_kernel(%arg0: i32, %arg1: i32, %arg2: memref<1x1x432x32xbf16, #tpu.memory_space<vmem>>, %arg3: memref<96x192xbf16, #tpu.memory_space<vmem>>, %arg4: memref<1x1x2x64xf32, #tpu.memory_space<vmem>>) attributes {dimension_semantics = [#tpu.dimension_semantics<parallel>, #tpu.dimension_semantics<parallel>], iteration_bounds = array<i64: 2, 1>, scalar_prefetch = 0 : i64, scratch_operands = 0 : i64, tpu.core_type = #tpu.core_type<tc>, window_params = [{transform_indices = @transform_0, window_bounds = array<i64: 1, 1, 432, 32>}, {pipeline_mode = #tpu.pipeline_mode<synchronous>, transform_indices = @transform_1, window_bounds = array<i64: 96, 192>}, {transform_indices = @transform_2, window_bounds = array<i64: 1, 1, 2, 64>}]} {
    %c0 = arith.constant 0 : index
    %c0_0 = arith.constant 0 : index
    %c0_1 = arith.constant 0 : index
    %c0_2 = arith.constant 0 : index
    %0 = vector.load %arg2[%c0, %c0_0, %c0_1, %c0_2] : memref<1x1x432x32xbf16, #tpu.memory_space<vmem>>, vector<1x1x384x32xbf16>
    %1 = vector.shape_cast %0 : vector<1x1x384x32xbf16> to vector<384x32xbf16>
    %c0_3 = arith.constant 0 : index
    %c0_4 = arith.constant 0 : index
    %c24 = arith.constant 24 : index
    %c0_5 = arith.constant 0 : index
    %2 = vector.load %arg2[%c0_3, %c0_4, %c24, %c0_5] : memref<1x1x432x32xbf16, #tpu.memory_space<vmem>>, vector<1x1x384x32xbf16>
    %3 = vector.shape_cast %2 : vector<1x1x384x32xbf16> to vector<384x32xbf16>
    %c0_6 = arith.constant 0 : index
    %c0_7 = arith.constant 0 : index
    %c48 = arith.constant 48 : index
    %c0_8 = arith.constant 0 : index
    %4 = vector.load %arg2[%c0_6, %c0_7, %c48, %c0_8] : memref<1x1x432x32xbf16, #tpu.memory_space<vmem>>, vector<1x1x384x32xbf16>
    %5 = vector.shape_cast %4 : vector<1x1x384x32xbf16> to vector<384x32xbf16>
    %6 = tpu.concatenate %1, %3, %5 in 1 : vector<384x32xbf16>, vector<384x32xbf16>, vector<384x32xbf16> -> vector<384x96xbf16>
    %c0_9 = arith.constant 0 : index
    %c0_10 = arith.constant 0 : index
    %7 = vector.load %arg3[%c0_9, %c0_10] : memref<96x192xbf16, #tpu.memory_space<vmem>>, vector<96x192xbf16>
    %cst = arith.constant dense<0.000000e+00> : vector<384x192xf32>
    %8 = tpu.matmul %6, %7, %cst {dimension_numbers = #tpu.dot_dimension_numbers<[1], [0], [0], [1], [0, 0, 1, 1], [], []>} : vector<384x96xbf16>, vector<96x192xbf16>, vector<384x192xf32> -> vector<384x192xf32>
    %9 = vector.extract_strided_slice %8 {offsets = [0, 0], sizes = [384, 64], strides = [1, 1]} : vector<384x192xf32> to vector<384x64xf32>
    %10 = vector.extract_strided_slice %8 {offsets = [0, 64], sizes = [384, 64], strides = [1, 1]} : vector<384x192xf32> to vector<384x64xf32>
    %c383_i32 = arith.constant 383 : i32
    %11 = tpu.dynamic_rotate %10 by %c383_i32 dim 0 : vector<384x64xf32>, i32 -> vector<384x64xf32>
    %12 = arith.addf %9, %11 : vector<384x64xf32>
    %13 = vector.extract_strided_slice %8 {offsets = [0, 128], sizes = [384, 64], strides = [1, 1]} : vector<384x192xf32> to vector<384x64xf32>
    %c382_i32 = arith.constant 382 : i32
    %14 = tpu.dynamic_rotate %13 by %c382_i32 dim 0 : vector<384x64xf32>, i32 -> vector<384x64xf32>
    %15 = arith.addf %12, %14 : vector<384x64xf32>
    %16 = vector.shape_cast %15 : vector<384x64xf32> to vector<16x24x64xf32>
    %17 = vector.extract_strided_slice %16 {offsets = [0, 0, 0], sizes = [16, 16, 64], strides = [1, 1, 1]} : vector<16x24x64xf32> to vector<16x16x64xf32>
    %18 = vector.shape_cast %17 : vector<16x16x64xf32> to vector<256x64xf32>
    %cst_11 = arith.constant dense<0.000000e+00> : vector<64xf32>
    %19 = vector.multi_reduction <add>, %18, %cst_11 [0] : vector<256x64xf32> to vector<64xf32>
    %20 = vector.shape_cast %19 : vector<64xf32> to vector<1x64xf32>
    %21 = arith.mulf %18, %18 : vector<256x64xf32>
    %cst_12 = arith.constant dense<0.000000e+00> : vector<64xf32>
    %22 = vector.multi_reduction <add>, %21, %cst_12 [0] : vector<256x64xf32> to vector<64xf32>
    %23 = vector.shape_cast %22 : vector<64xf32> to vector<1x64xf32>
    %24 = tpu.concatenate %20, %23 in 0 : vector<1x64xf32>, vector<1x64xf32> -> vector<2x64xf32>
    %25 = vector.shape_cast %24 : vector<2x64xf32> to vector<1x1x2x64xf32>
    %c0_13 = arith.constant 0 : index
    %c0_14 = arith.constant 0 : index
    %c0_15 = arith.constant 0 : index
    %c0_16 = arith.constant 0 : index
    %26 = vector.load %arg4[%c0_13, %c0_14, %c0_15, %c0_16] : memref<1x1x2x64xf32, #tpu.memory_space<vmem>>, vector<1x1x2x64xf32>
    tpu.vector_store %arg4[%c0_13, %c0_14, %c0_15, %c0_16], %25 {strides = array<i32>} : memref<1x1x2x64xf32, #tpu.memory_space<vmem>>, vector<1x1x2x64xf32>,
    return
  }
  func.func @transform_0(%arg0: i32, %arg1: i32) -> (i32, i32, i32, i32) {
    %c0_i32 = arith.constant 0 : i32
    %c0_i32_0 = arith.constant 0 : i32
    %c0_i32_1 = arith.constant 0 : i32
    return %arg0, %arg1, %c0_i32, %c0_i32_0 : i32, i32, i32, i32
  }
  func.func @transform_1(%arg0: i32, %arg1: i32) -> (i32, i32) {
    %c0_i32 = arith.constant 0 : i32
    %c0_i32_0 = arith.constant 0 : i32
    %c0_i32_1 = arith.constant 0 : i32
    return %c0_i32, %c0_i32_0 : i32, i32
  }
  func.func @transform_2(%arg0: i32, %arg1: i32) -> (i32, i32, i32, i32) {
    %c0_i32 = arith.constant 0 : i32
    %c0_i32_0 = arith.constant 0 : i32
    %c0_i32_1 = arith.constant 0 : i32
    return %arg0, %arg1, %c0_i32, %c0_i32_0 : i32, i32, i32, i32
  }
}

module attributes {stable_mosaic.version = 11 : i64} {
  func.func @_conv_bn_pool_kernel(%arg0: i32, %arg1: i32, %arg2: memref<1x1x432x32xbf16, #tpu.memory_space<vmem>>, %arg3: memref<96x192xbf16, #tpu.memory_space<vmem>>, %arg4: memref<1x64xf32, #tpu.memory_space<vmem>>, %arg5: memref<1x64xf32, #tpu.memory_space<vmem>>, %arg6: memref<1x8x8x64xf32, #tpu.memory_space<vmem>>, %arg7: memref<128x64xf32, #tpu.memory_space<vmem>>) attributes {dimension_semantics = [#tpu.dimension_semantics<parallel>, #tpu.dimension_semantics<parallel>], iteration_bounds = array<i64: 2, 1>, scalar_prefetch = 0 : i64, scratch_operands = 1 : i64, tpu.core_type = #tpu.core_type<tc>, window_params = [{transform_indices = @transform_0, window_bounds = array<i64: 1, 1, 432, 32>}, {pipeline_mode = #tpu.pipeline_mode<synchronous>, transform_indices = @transform_1, window_bounds = array<i64: 96, 192>}, {pipeline_mode = #tpu.pipeline_mode<synchronous>, transform_indices = @transform_2, window_bounds = array<i64: 1, 64>}, {pipeline_mode = #tpu.pipeline_mode<synchronous>, transform_indices = @transform_3, window_bounds = array<i64: 1, 64>}, {transform_indices = @transform_4, window_bounds = array<i64: 1, 8, 8, 64>}]} {
    %c0 = arith.constant 0 : index
    %c0_0 = arith.constant 0 : index
    %c0_1 = arith.constant 0 : index
    %c0_2 = arith.constant 0 : index
    %0 = vector.load %arg2[%c0, %c0_0, %c0_1, %c0_2] : memref<1x1x432x32xbf16, #tpu.memory_space<vmem>>, vector<1x1x384x32xbf16>
    %1 = vector.shape_cast %0 : vector<1x1x384x32xbf16> to vector<384x32xbf16>
    %c0_3 = arith.constant 0 : index
    %c0_4 = arith.constant 0 : index
    %c24 = arith.constant 24 : index
    %c0_5 = arith.constant 0 : index
    %2 = vector.load %arg2[%c0_3, %c0_4, %c24, %c0_5] : memref<1x1x432x32xbf16, #tpu.memory_space<vmem>>, vector<1x1x384x32xbf16>
    %3 = vector.shape_cast %2 : vector<1x1x384x32xbf16> to vector<384x32xbf16>
    %c0_6 = arith.constant 0 : index
    %c0_7 = arith.constant 0 : index
    %c48 = arith.constant 48 : index
    %c0_8 = arith.constant 0 : index
    %4 = vector.load %arg2[%c0_6, %c0_7, %c48, %c0_8] : memref<1x1x432x32xbf16, #tpu.memory_space<vmem>>, vector<1x1x384x32xbf16>
    %5 = vector.shape_cast %4 : vector<1x1x384x32xbf16> to vector<384x32xbf16>
    %6 = tpu.concatenate %1, %3, %5 in 1 : vector<384x32xbf16>, vector<384x32xbf16>, vector<384x32xbf16> -> vector<384x96xbf16>
    %c0_9 = arith.constant 0 : index
    %c0_10 = arith.constant 0 : index
    %7 = vector.load %arg3[%c0_9, %c0_10] : memref<96x192xbf16, #tpu.memory_space<vmem>>, vector<96x192xbf16>
    %cst = arith.constant dense<0.000000e+00> : vector<384x192xf32>
    %8 = tpu.matmul %6, %7, %cst {dimension_numbers = #tpu.dot_dimension_numbers<[1], [0], [0], [1], [0, 0, 1, 1], [], []>} : vector<384x96xbf16>, vector<96x192xbf16>, vector<384x192xf32> -> vector<384x192xf32>
    %9 = vector.extract_strided_slice %8 {offsets = [0, 0], sizes = [384, 64], strides = [1, 1]} : vector<384x192xf32> to vector<384x64xf32>
    %10 = vector.extract_strided_slice %8 {offsets = [0, 64], sizes = [384, 64], strides = [1, 1]} : vector<384x192xf32> to vector<384x64xf32>
    %c383_i32 = arith.constant 383 : i32
    %11 = tpu.dynamic_rotate %10 by %c383_i32 dim 0 : vector<384x64xf32>, i32 -> vector<384x64xf32>
    %12 = arith.addf %9, %11 : vector<384x64xf32>
    %13 = vector.extract_strided_slice %8 {offsets = [0, 128], sizes = [384, 64], strides = [1, 1]} : vector<384x192xf32> to vector<384x64xf32>
    %c382_i32 = arith.constant 382 : i32
    %14 = tpu.dynamic_rotate %13 by %c382_i32 dim 0 : vector<384x64xf32>, i32 -> vector<384x64xf32>
    %15 = arith.addf %12, %14 : vector<384x64xf32>
    %16 = vector.shape_cast %15 : vector<384x64xf32> to vector<16x24x64xf32>
    %17 = vector.extract_strided_slice %16 {offsets = [0, 0, 0], sizes = [16, 16, 64], strides = [1, 1, 1]} : vector<16x24x64xf32> to vector<16x16x64xf32>
    %c0_11 = arith.constant 0 : index
    %c0_12 = arith.constant 0 : index
    %18 = vector.load %arg4[%c0_11, %c0_12] : memref<1x64xf32, #tpu.memory_space<vmem>>, vector<1x64xf32>
    %19 = vector.shape_cast %18 : vector<1x64xf32> to vector<1x1x64xf32>
    %20 = vector.broadcast %19 : vector<1x1x64xf32> to vector<16x16x64xf32>
    %21 = arith.mulf %17, %20 : vector<16x16x64xf32>
    %c0_13 = arith.constant 0 : index
    %c0_14 = arith.constant 0 : index
    %22 = vector.load %arg5[%c0_13, %c0_14] : memref<1x64xf32, #tpu.memory_space<vmem>>, vector<1x64xf32>
    %23 = vector.shape_cast %22 : vector<1x64xf32> to vector<1x1x64xf32>
    %24 = vector.broadcast %23 : vector<1x1x64xf32> to vector<16x16x64xf32>
    %25 = arith.addf %21, %24 : vector<16x16x64xf32>
    %cst_15 = arith.constant 0.000000e+00 : f32
    %26 = vector.broadcast %cst_15 : f32 to vector<16x16x64xf32>
    %27 = arith.maximumf %25, %26 : vector<16x16x64xf32>
    %28 = vector.shape_cast %27 : vector<16x16x64xf32> to vector<8x2x16x64xf32>
    %29 = vector.extract_strided_slice %28 {offsets = [0, 0, 0, 0], sizes = [8, 1, 16, 64], strides = [1, 1, 1, 1]} : vector<8x2x16x64xf32> to vector<8x1x16x64xf32>
    %30 = vector.shape_cast %29 : vector<8x1x16x64xf32> to vector<8x16x64xf32>
    %31 = vector.extract_strided_slice %28 {offsets = [0, 1, 0, 0], sizes = [8, 1, 16, 64], strides = [1, 1, 1, 1]} : vector<8x2x16x64xf32> to vector<8x1x16x64xf32>
    %32 = vector.shape_cast %31 : vector<8x1x16x64xf32> to vector<8x16x64xf32>
    %33 = arith.addf %30, %32 : vector<8x16x64xf32>
    %34 = vector.shape_cast %33 : vector<8x16x64xf32> to vector<128x64xf32>
    %c0_16 = arith.constant 0 : index
    %c0_17 = arith.constant 0 : index
    %35 = vector.load %arg7[%c0_16, %c0_17] : memref<128x64xf32, #tpu.memory_space<vmem>>, vector<128x64xf32>
    tpu.vector_store %arg7[%c0_16, %c0_17], %34 {strides = array<i32>} : memref<128x64xf32, #tpu.memory_space<vmem>>, vector<128x64xf32>,
    %c0_18 = arith.constant 0 : index
    %c0_19 = arith.constant 0 : index
    %36 = tpu.strided_load %arg7[%c0_18, %c0_19] {strides = array<i32: 2, 1>} : memref<128x64xf32, #tpu.memory_space<vmem>>, vector<64x64xf32>
    %c1 = arith.constant 1 : index
    %c0_20 = arith.constant 0 : index
    %37 = tpu.strided_load %arg7[%c1, %c0_20] {strides = array<i32: 2, 1>} : memref<128x64xf32, #tpu.memory_space<vmem>>, vector<64x64xf32>
    %38 = arith.addf %36, %37 : vector<64x64xf32>
    %cst_21 = arith.constant 2.500000e-01 : f32
    %39 = vector.broadcast %cst_21 : f32 to vector<64x64xf32>
    %40 = arith.mulf %38, %39 : vector<64x64xf32>
    %41 = vector.shape_cast %40 : vector<64x64xf32> to vector<1x8x8x64xf32>
    %c0_22 = arith.constant 0 : index
    %c0_23 = arith.constant 0 : index
    %c0_24 = arith.constant 0 : index
    %c0_25 = arith.constant 0 : index
    %42 = vector.load %arg6[%c0_22, %c0_23, %c0_24, %c0_25] : memref<1x8x8x64xf32, #tpu.memory_space<vmem>>, vector<1x8x8x64xf32>
    tpu.vector_store %arg6[%c0_22, %c0_23, %c0_24, %c0_25], %41 {strides = array<i32>} : memref<1x8x8x64xf32, #tpu.memory_space<vmem>>, vector<1x8x8x64xf32>,
    return
  }
  func.func @transform_0(%arg0: i32, %arg1: i32) -> (i32, i32, i32, i32) {
    %c0_i32 = arith.constant 0 : i32
    %c0_i32_0 = arith.constant 0 : i32
    %c0_i32_1 = arith.constant 0 : i32
    return %arg0, %arg1, %c0_i32, %c0_i32_0 : i32, i32, i32, i32
  }
  func.func @transform_1(%arg0: i32, %arg1: i32) -> (i32, i32) {
    %c0_i32 = arith.constant 0 : i32
    %c0_i32_0 = arith.constant 0 : i32
    %c0_i32_1 = arith.constant 0 : i32
    return %c0_i32, %c0_i32_0 : i32, i32
  }
  func.func @transform_2(%arg0: i32, %arg1: i32) -> (i32, i32) {
    %c0_i32 = arith.constant 0 : i32
    %c0_i32_0 = arith.constant 0 : i32
    %c0_i32_1 = arith.constant 0 : i32
    return %c0_i32, %c0_i32_0 : i32, i32
  }
  func.func @transform_3(%arg0: i32, %arg1: i32) -> (i32, i32) {
    %c0_i32 = arith.constant 0 : i32
    %c0_i32_0 = arith.constant 0 : i32
    %c0_i32_1 = arith.constant 0 : i32
    return %c0_i32, %c0_i32_0 : i32, i32
  }
  func.func @transform_4(%arg0: i32, %arg1: i32) -> (i32, i32, i32, i32) {
    %c0_i32 = arith.constant 0 : i32
    %c0_i32_0 = arith.constant 0 : i32
    %c0_i32_1 = arith.constant 0 : i32
    return %arg0, %arg1, %c0_i32, %c0_i32_0 : i32, i32, i32, i32
  }
}

</mosaic_0001>

<llo_original>
// kernel: downblock2d_forward.2
$region0: #{downblock2d_forward.2}
  #allocation0 [shape = 'u32[]', space=smem, size = 0x4, offset = 0x4, fixed_abs, tag = 'smem constant byte address 0x4 - core index']
  #allocation1 [shape = 'u32[72,128]{1,0:T(1,128)}', space=vmem, size = 0x9000, scoped, tag = 'internal scratch']
  %s0 = inlined_call_operand.vmem [shape: bf16[2,1,432,32], index: 0, kind: input, shape index: {}]
  %s1 = inlined_call_operand.vmem [shape: bf16[96,192], index: 1, kind: input, shape index: {}]
  %s2 = inlined_call_operand.vmem [shape: f32[2,1,2,64], index: 2, kind: output, shape index: {}]
  %s3 = sld [smem:[#allocation0]]
  $region41: #{downblock2d_forward.2} parent=0
    _
  %s5 = ssub.s32 1, %s3
  %s6 = scalar_select 0, %s5, %s3
  loop: start=0, step=1, limit=4
  $region2: #{downblock2d_forward.2} parent=0 // loop_pre_header
    _
  $region3: #{downblock2d_forward.2} parent=0 // loop_header
    %s8 = sphi 0, %s12
    %p9 = scmp.ge.s32.totalorder %s8, 4
    %s15 = sphi 0, %s27
    %s16 = sphi 0, %s23
    %s17 = sphi 0, %s15
    %s18 = sphi 0, %s16
    %s19 = sphi 0, %s17
    %s20 = sphi 0, %s18
    %s32 = sphi 0, %s34
    %s35 = sphi 0, %s32
    %s36 = sphi 0, %s35
    %s52 = sphi 0, %s36
    %s56 = sphi 0, %s56
    %s58 = sphi 0, %s56
    %s59 = sphi 0, %s58
    %s73 = sphi 0, %s59
    %s81 = sphi 0, %s83
    %s84 = sphi 0, %s81
    %s85 = sphi 0, %s84
    %s101 = sphi 0, %s85
  $region4: #{downblock2d_forward.2} parent=0 // loop_header_branch
    %11 = sbr.rel (%p9) target = $region8
  $region5: #{downblock2d_forward.2} parent=0 // loop_body
    %s13 = ssub.s32 %s8, 1
    %s14 = ssub.s32 %s8, 2
    %s21 = sadd.s32 1, %s16
    %p22 = scmp.ge.s32.totalorder %s21, 1
    %s23 = scalar_select %p22, 0, %s21
    %s24 = sadd.s32 1, %s15
    %s25 = scalar_select %p22, %s24, %s15
    %p26 = scmp.ge.s32.totalorder %s25, 2
    %s27 = scalar_select %p26, 0, %s25
    %s28 = ssub.s32 %s15, %s27
    %s29 = ssub.s32 %s16, %s23
    %s30 = sor.u32 %s28, %s29
    %p31 = scmp.eq.s32.totalorder %s30, 0
    %s33 = sadd.s32 %s32, 1
    %s34 = scalar_select %p31, %s32, %s33
    %p37 = pneg %p31
    %p38 = scmp.eq.s32.totalorder %s8, 1
    %p39 = por %p37, %p38
    %p40 = scmp.ne.s32.totalorder %s32, %s35
    %p41 = scmp.eq.s32.totalorder %s8, 0
    %p42 = por %p40, %p41
    %p43 = scmp.ne.s32.totalorder %s32, %s35
    %p44 = scmp.eq.s32.totalorder %s13, 1
    %p45 = por %p43, %p44
    %p46 = scmp.ne.s32.totalorder %s35, %s36
    %p47 = scmp.eq.s32.totalorder %s13, 0
    %p48 = por %p46, %p47
    %p49 = scmp.ne.s32.totalorder %s35, %s36
    %p50 = scmp.eq.s32.totalorder %s14, 1
    %p51 = por %p49, %p50
    %p53 = scmp.ne.s32.totalorder %s36, %s52
    %p54 = scmp.eq.s32.totalorder %s14, 0
    %p55 = por %p53, %p54
    %s57 = sadd.s32 %s56, 1
    %p60 = scmp.eq.s32.totalorder %s8, 1
    %p61 = scmp.ne.s32.totalorder %s56, %s58
    %p62 = scmp.eq.s32.totalorder %s8, 0
    %p63 = por %p61, %p62
    %p64 = scmp.ne.s32.totalorder %s56, %s58
    %p65 = scmp.eq.s32.totalorder %s13, 1
    %p66 = por %p64, %p65
    %p67 = scmp.ne.s32.totalorder %s58, %s59
    %p68 = scmp.eq.s32.totalorder %s13, 0
    %p69 = por %p67, %p68
    %p70 = scmp.ne.s32.totalorder %s58, %s59
    %p71 = scmp.eq.s32.totalorder %s14, 1
    %p72 = por %p70, %p71
    %p74 = scmp.ne.s32.totalorder %s59, %s73
    %p75 = scmp.eq.s32.totalorder %s14, 0
    %p76 = por %p74, %p75
    %s77 = ssub.s32 %s15, %s27
    %s78 = ssub.s32 %s16, %s23
    %s79 = sor.u32 %s77, %s78
    %p80 = scmp.eq.s32.totalorder %s79, 0
    %s82 = sadd.s32 %s81, 1
    %s83 = scalar_select %p80, %s81, %s82
    %p86 = pneg %p80
    %p87 = scmp.eq.s32.totalorder %s8, 1
    %p88 = por %p86, %p87
    %p89 = scmp.ne.s32.totalorder %s81, %s84
    %p90 = scmp.eq.s32.totalorder %s8, 0
    %p91 = por %p89, %p90
    %p92 = scmp.ne.s32.totalorder %s81, %s84
    %p93 = scmp.eq.s32.totalorder %s13, 1
    %p94 = por %p92, %p93
    %p95 = scmp.ne.s32.totalorder %s84, %s85
    %p96 = scmp.eq.s32.totalorder %s13, 0
    %p97 = por %p95, %p96
    %p98 = scmp.ne.s32.totalorder %s84, %s85
    %p99 = scmp.eq.s32.totalorder %s14, 1
    %p100 = por %p98, %p99
    %p102 = scmp.ne.s32.totalorder %s85, %s101
    %p103 = scmp.eq.s32.totalorder %s14, 0
    %p104 = por %p102, %p103
    %p105 = scmp.le.s32.totalorder 1, %s8
    %p106 = scmp.lt.s32.totalorder %s8, 3
    %p107 = pnand %p105, %p106
    %p108 = pneg %p107
    // Predicated region
    $region9: #{downblock2d_forward.2} parent=5 // pred_check
      _
    $region10: #{downblock2d_forward.2} parent=5 // pred_check_branch
      %110 = sbr.rel (%p107) target = $region12
    $region11: #{downblock2d_forward.2} parent=5 // pred_region
      %s111 = ssub.s32 %s8, 1
      // Predicated region
      $region13: #{downblock2d_forward.2} parent=11 // pred_check
        %p112 = pneg %p69
      $region14: #{downblock2d_forward.2} parent=11 // pred_check_branch
        %114 = sbr.rel (%p112) target = $region16
      $region15: #{downblock2d_forward.2} parent=11 // pred_region
        _
      $region16: #{downblock2d_forward.2} parent=11 // pred_fallthru
        _
    $region12: #{downblock2d_forward.2} parent=5 // pred_fallthru
      _
    %p115 = scmp.lt.s32.totalorder %s8, 2
    // Predicated region
    $region17: #{downblock2d_forward.2} parent=5 // pred_check
      %p116 = pneg %p115
    $region18: #{downblock2d_forward.2} parent=5 // pred_check_branch
      %118 = sbr.rel (%p116) target = $region20
    $region19: #{downblock2d_forward.2} parent=5 // pred_region
      // Predicated region
      $region21: #{downblock2d_forward.2} parent=19 // pred_check
        %p119 = pneg %p42
      $region22: #{downblock2d_forward.2} parent=19 // pred_check_branch
        %121 = sbr.rel (%p119) target = $region24
      $region23: #{downblock2d_forward.2} parent=19 // pred_region
        %p122 = scmp.lt.s32.totalorder %s15, 1
        %s123 = scalar_select %p122, %s15, 1
        %p124 = scmp.lt.s32.totalorder %s16, 0
        %s125 = scalar_select %p124, %s16, 0
        %s126 = smul.addr %s125, 54
        %s127 = smul.addr %s123, 54
        %s128 = sadd.s32 %s126, %s127
        %s129 = smul.addr %s128, 4
        %s130 = scalar_lea.vmem %s0, %s129
      $region24: #{downblock2d_forward.2} parent=19 // pred_fallthru
        _
    $region20: #{downblock2d_forward.2} parent=5 // pred_fallthru
      _
    %p131 = scmp.le.s32.totalorder 1, %s8
    %p132 = scmp.lt.s32.totalorder %s8, 3
    %p133 = pnand %p131, %p132
    %p134 = pneg %p133
    // Predicated region
    $region25: #{downblock2d_forward.2} parent=5 // pred_check
      _
    $region26: #{downblock2d_forward.2} parent=5 // pred_check_branch
      %136 = sbr.rel (%p133) target = $region28
    $region27: #{downblock2d_forward.2} parent=5 // pred_region
      %s137 = ssub.s32 %s8, 1
      %p138 = scmp.lt.s32.totalorder %s17, 1
      %s139 = scalar_select %p138, %s17, 1
      %p140 = scmp.lt.s32.totalorder %s18, 0
      %s141 = scalar_select %p140, %s18, 0
      %s142 = smul.addr %s141, 54
      %s143 = smul.addr %s139, 54
      %s144 = sadd.s32 %s142, %s143
      %s145 = smul.addr %s144, 4
      %s146 = scalar_lea.vmem %s0, %s145
      %p147 = pneg %p48
      %p148 = pneg %p45
      %p149 = pneg %p69
      %p150 = pneg %p66
      %p151 = pneg %p97
      %p152 = pneg %p94
      %p153 = scmp.lt.s32.totalorder %s17, 1
      %s154 = scalar_select %p153, %s17, 1
      %p155 = scmp.lt.s32.totalorder %s18, 0
      %s156 = scalar_select %p155, %s18, 0
      %s157 = sadd.s32 %s156, %s154
      %s158 = smul.addr %s157, 2
      %s159 = scalar_lea.vmem %s2, %s158
      %p160 = scmp.lt.s32.totalorder %s17, 1
      %s161 = scalar_select %p160, %s17, 1
      %p162 = scmp.lt.s32.totalorder %s18, 0
      %s163 = scalar_select %p162, %s18, 0
      %s164 = smul.addr %s163, 54
      %s165 = smul.addr %s161, 54
      %s166 = sadd.s32 %s164, %s165
      %s167 = smul.addr %s166, 4
      %s168 = scalar_lea.vmem %s0, %s167
      %p169 = scmp.lt.s32.totalorder %s17, 1
      %s170 = scalar_select %p169, %s17, 1
      %p171 = scmp.lt.s32.totalorder %s18, 0
      %s172 = scalar_select %p171, %s18, 0
      %s173 = sadd.s32 %s172, %s170
      %s174 = smul.addr %s173, 2
      %s175 = scalar_lea.vmem %s2, %s174
      %v177 = vld [vmem:[%s168] sm:$0xf]
      %v178 = vld [vmem:[%s168 + $0x4] sm:$0xf]
      %v179 = vld [vmem:[%s168 + $0x8] sm:$0xf]
      %v180 = vld [vmem:[%s168 + $0xc] sm:$0xf]
      %v181 = vld [vmem:[%s168 + $0x10] sm:$0xf]
      %v182 = vld [vmem:[%s168 + $0x14] sm:$0xf]
      %v183 = vld [vmem:[%s168 + $0x18] sm:$0xf]
      %v184 = vld [vmem:[%s168 + $0x1c] sm:$0xf]
      %v185 = vld [vmem:[%s168 + $0x20] sm:$0xf]
      %v186 = vld [vmem:[%s168 + $0x24] sm:$0xf]
      %v187 = vld [vmem:[%s168 + $0x28] sm:$0xf]
      %v188 = vld [vmem:[%s168 + $0x2c] sm:$0xf]
      %v189 = vld [vmem:[%s168 + $0x30] sm:$0xf]
      %v190 = vld [vmem:[%s168 + $0x34] sm:$0xf]
      %v191 = vld [vmem:[%s168 + $0x38] sm:$0xf]
      %v192 = vld [vmem:[%s168 + $0x3c] sm:$0xf]
      %v193 = vld [vmem:[%s168 + $0x40] sm:$0xf]
      %v194 = vld [vmem:[%s168 + $0x44] sm:$0xf]
      %v195 = vld [vmem:[%s168 + $0x48] sm:$0xf]
      %v196 = vld [vmem:[%s168 + $0x4c] sm:$0xf]
      %v197 = vld [vmem:[%s168 + $0x50] sm:$0xf]
      %v198 = vld [vmem:[%s168 + $0x54] sm:$0xf]
      %v199 = vld [vmem:[%s168 + $0x58] sm:$0xf]
      %v200 = vld [vmem:[%s168 + $0x5c] sm:$0xf]
      %v201 = vld [vmem:[%s168 + $0x60] sm:$0xf]
      %v202 = vld [vmem:[%s168 + $0x64] sm:$0xf]
      %v203 = vld [vmem:[%s168 + $0x68] sm:$0xf]
      %v204 = vld [vmem:[%s168 + $0x6c] sm:$0xf]
      %v205 = vld [vmem:[%s168 + $0x70] sm:$0xf]
      %v206 = vld [vmem:[%s168 + $0x74] sm:$0xf]
      %v207 = vld [vmem:[%s168 + $0x78] sm:$0xf]
      %v208 = vld [vmem:[%s168 + $0x7c] sm:$0xf]
      %v209 = vld [vmem:[%s168 + $0x80] sm:$0xf]
      %v210 = vld [vmem:[%s168 + $0x84] sm:$0xf]
      %v211 = vld [vmem:[%s168 + $0x88] sm:$0xf]
      %v212 = vld [vmem:[%s168 + $0x8c] sm:$0xf]
      %v213 = vld [vmem:[%s168 + $0x90] sm:$0xf]
      %v214 = vld [vmem:[%s168 + $0x94] sm:$0xf]
      %v215 = vld [vmem:[%s168 + $0x98] sm:$0xf]
      %v216 = vld [vmem:[%s168 + $0x9c] sm:$0xf]
      %v217 = vld [vmem:[%s168 + $0xa0] sm:$0xf]
      %v218 = vld [vmem:[%s168 + $0xa4] sm:$0xf]
      %v219 = vld [vmem:[%s168 + $0xa8] sm:$0xf]
      %v220 = vld [vmem:[%s168 + $0xac] sm:$0xf]
      %v221 = vld [vmem:[%s168 + $0xb0] sm:$0xf]
      %v222 = vld [vmem:[%s168 + $0xb4] sm:$0xf]
      %v223 = vld [vmem:[%s168 + $0xb8] sm:$0xf]
      %v224 = vld [vmem:[%s168 + $0xbc] sm:$0xf]
      %v225 = vld [vmem:[%s168 + $0xc0] sm:$0xf]
      %v226 = vld [vmem:[%s168 + $0xc4] sm:$0xf]
      %v227 = vld [vmem:[%s168 + $0xc8] sm:$0xf]
      %v228 = vld [vmem:[%s168 + $0xcc] sm:$0xf]
      %v229 = vld [vmem:[%s168 + $0xd0] sm:$0xf]
      %v230 = vld [vmem:[%s168 + $0xd4] sm:$0xf]
      %v279 = vunpack.c.l.b16 %v177
      %v280 = vunpack.c.l.b16 %v178
      %v281 = vunpack.c.l.b16 %v179
      %v282 = vunpack.c.l.b16 %v180
      %v283 = vunpack.c.l.b16 %v181
      %v284 = vunpack.c.l.b16 %v182
      %v285 = vunpack.c.l.b16 %v183
      %v286 = vunpack.c.l.b16 %v184
      %v287 = vunpack.c.l.b16 %v185
      %v288 = vunpack.c.l.b16 %v186
      %v289 = vunpack.c.l.b16 %v187
      %v290 = vunpack.c.l.b16 %v188
      %v291 = vunpack.c.l.b16 %v189
      %v292 = vunpack.c.l.b16 %v190
      %v293 = vunpack.c.l.b16 %v191
      %v294 = vunpack.c.l.b16 %v192
      %v295 = vunpack.c.l.b16 %v193
      %v296 = vunpack.c.l.b16 %v194
      %v297 = vunpack.c.l.b16 %v195
      %v298 = vunpack.c.l.b16 %v196
      %v299 = vunpack.c.l.b16 %v197
      %v300 = vunpack.c.l.b16 %v198
      %v301 = vunpack.c.l.b16 %v199
      %v302 = vunpack.c.l.b16 %v200
      %v303 = vunpack.c.l.b16 %v201
      %v304 = vunpack.c.l.b16 %v202
      %v305 = vunpack.c.l.b16 %v203
      %v306 = vunpack.c.l.b16 %v204
      %v307 = vunpack.c.l.b16 %v205
      %v308 = vunpack.c.l.b16 %v206
      %v309 = vunpack.c.l.b16 %v207
      %v310 = vunpack.c.l.b16 %v208
      %v311 = vunpack.c.l.b16 %v209
      %v312 = vunpack.c.l.b16 %v210
      %v313 = vunpack.c.l.b16 %v211
      %v314 = vunpack.c.l.b16 %v212
      %v315 = vunpack.c.l.b16 %v213
      %v316 = vunpack.c.l.b16 %v214
      %v317 = vunpack.c.l.b16 %v215
      %v318 = vunpack.c.l.b16 %v216
      %v319 = vunpack.c.l.b16 %v217
      %v320 = vunpack.c.l.b16 %v218
      %v321 = vunpack.c.l.b16 %v219
      %v322 = vunpack.c.l.b16 %v220
      %v323 = vunpack.c.l.b16 %v221
      %v324 = vunpack.c.l.b16 %v222
      %v325 = vunpack.c.l.b16 %v223
      %v326 = vunpack.c.l.b16 %v224
      %v327 = vpack.c.b16 %v280, %v279
      %v328 = vpack.c.b16 %v282, %v281
      %v329 = vpack.c.b16 %v284, %v283
      %v330 = vpack.c.b16 %v286, %v285
      %v331 = vpack.c.b16 %v288, %v287
      %v332 = vpack.c.b16 %v290, %v289
      %v333 = vpack.c.b16 %v292, %v291
      %v334 = vpack.c.b16 %v294, %v293
      %v335 = vpack.c.b16 %v296, %v295
      %v336 = vpack.c.b16 %v298, %v297
      %v337 = vpack.c.b16 %v300, %v299
      %v338 = vpack.c.b16 %v302, %v301
      %v339 = vpack.c.b16 %v304, %v303
      %v340 = vpack.c.b16 %v306, %v305
      %v341 = vpack.c.b16 %v308, %v307
      %v342 = vpack.c.b16 %v310, %v309
      %v343 = vpack.c.b16 %v312, %v311
      %v344 = vpack.c.b16 %v314, %v313
      %v345 = vpack.c.b16 %v316, %v315
      %v346 = vpack.c.b16 %v318, %v317
      %v347 = vpack.c.b16 %v320, %v319
      %v348 = vpack.c.b16 %v322, %v321
      %v349 = vpack.c.b16 %v324, %v323
      %v350 = vpack.c.b16 %v326, %v325
      %v354 = vunpack.c.l.b16 %v225
      %v355 = vunpack.c.l.b16 %v226
      %v356 = vunpack.c.l.b16 %v227
      %v357 = vpack.c.b16 %v283, %v282
      %v358 = vpack.c.b16 %v285, %v284
      %v359 = vpack.c.b16 %v287, %v286
      %v360 = vpack.c.b16 %v289, %v288
      %v361 = vpack.c.b16 %v291, %v290
      %v362 = vpack.c.b16 %v293, %v292
      %v363 = vpack.c.b16 %v295, %v294
      %v364 = vpack.c.b16 %v297, %v296
      %v365 = vpack.c.b16 %v299, %v298
      %v366 = vpack.c.b16 %v301, %v300
      %v367 = vpack.c.b16 %v303, %v302
      %v368 = vpack.c.b16 %v305, %v304
      %v369 = vpack.c.b16 %v307, %v306
      %v370 = vpack.c.b16 %v309, %v308
      %v371 = vpack.c.b16 %v311, %v310
      %v372 = vpack.c.b16 %v313, %v312
      %v373 = vpack.c.b16 %v315, %v314
      %v374 = vpack.c.b16 %v317, %v316
      %v375 = vpack.c.b16 %v319, %v318
      %v376 = vpack.c.b16 %v321, %v320
      %v377 = vpack.c.b16 %v323, %v322
      %v378 = vpack.c.b16 %v325, %v324
      %v379 = vpack.c.b16 %v354, %v326
      %v380 = vpack.c.b16 %v356, %v355
      %381 = vrot.lane.b32.xlu0 %v357, 32
      %v382 = vpop.permute.xlu0 %381
      %383 = vrot.lane.b32.xlu0 %v358, 32
      %v384 = vpop.permute.xlu0 %383
      %385 = vrot.lane.b32.xlu0 %v359, 32
      %v386 = vpop.permute.xlu0 %385
      %387 = vrot.lane.b32.xlu0 %v360, 32
      %v388 = vpop.permute.xlu0 %387
      %389 = vrot.lane.b32.xlu0 %v361, 32
      %v390 = vpop.permute.xlu0 %389
      %391 = vrot.lane.b32.xlu0 %v362, 32
      %v392 = vpop.permute.xlu0 %391
      %393 = vrot.lane.b32.xlu0 %v363, 32
      %v394 = vpop.permute.xlu0 %393
      %395 = vrot.lane.b32.xlu0 %v364, 32
      %v396 = vpop.permute.xlu0 %395
      %397 = vrot.lane.b32.xlu0 %v365, 32
      %v398 = vpop.permute.xlu0 %397
      %399 = vrot.lane.b32.xlu0 %v366, 32
      %v400 = vpop.permute.xlu0 %399
      %401 = vrot.lane.b32.xlu0 %v367, 32
      %v402 = vpop.permute.xlu0 %401
      %403 = vrot.lane.b32.xlu0 %v368, 32
      %v404 = vpop.permute.xlu0 %403
      %405 = vrot.lane.b32.xlu0 %v369, 32
      %v406 = vpop.permute.xlu0 %405
      %407 = vrot.lane.b32.xlu0 %v370, 32
      %v408 = vpop.permute.xlu0 %407
      %409 = vrot.lane.b32.xlu0 %v371, 32
      %v410 = vpop.permute.xlu0 %409
      %411 = vrot.lane.b32.xlu0 %v372, 32
      %v412 = vpop.permute.xlu0 %411
      %413 = vrot.lane.b32.xlu0 %v373, 32
      %v414 = vpop.permute.xlu0 %413
      %415 = vrot.lane.b32.xlu0 %v374, 32
      %v416 = vpop.permute.xlu0 %415
      %417 = vrot.lane.b32.xlu0 %v375, 32
      %v418 = vpop.permute.xlu0 %417
      %419 = vrot.lane.b32.xlu0 %v376, 32
      %v420 = vpop.permute.xlu0 %419
      %421 = vrot.lane.b32.xlu0 %v377, 32
      %v422 = vpop.permute.xlu0 %421
      %423 = vrot.lane.b32.xlu0 %v378, 32
      %v424 = vpop.permute.xlu0 %423
      %425 = vrot.lane.b32.xlu0 %v379, 32
      %v426 = vpop.permute.xlu0 %425
      %427 = vrot.lane.b32.xlu0 %v380, 32
      %v428 = vpop.permute.xlu0 %427
      %v432 = vunpack.c.l.b16 %v228
      %v433 = vunpack.c.l.b16 %v229
      %v434 = vunpack.c.l.b16 %v230
      %v435 = vpack.c.b16 %v355, %v354
      %v436 = vpack.c.b16 %v432, %v356
      %v437 = vpack.c.b16 %v434, %v433
      %438 = vrot.lane.b32.xlu0 %v330, 64
      %v439 = vpop.permute.xlu0 %438
      %440 = vrot.lane.b32.xlu0 %v331, 64
      %v441 = vpop.permute.xlu0 %440
      %442 = vrot.lane.b32.xlu0 %v332, 64
      %v443 = vpop.permute.xlu0 %442
      %444 = vrot.lane.b32.xlu0 %v333, 64
      %v445 = vpop.permute.xlu0 %444
      %446 = vrot.lane.b32.xlu0 %v334, 64
      %v447 = vpop.permute.xlu0 %446
      %448 = vrot.lane.b32.xlu0 %v335, 64
      %v449 = vpop.permute.xlu0 %448
      %450 = vrot.lane.b32.xlu0 %v336, 64
      %v451 = vpop.permute.xlu0 %450
      %452 = vrot.lane.b32.xlu0 %v337, 64
      %v453 = vpop.permute.xlu0 %452
      %454 = vrot.lane.b32.xlu0 %v338, 64
      %v455 = vpop.permute.xlu0 %454
      %456 = vrot.lane.b32.xlu0 %v339, 64
      %v457 = vpop.permute.xlu0 %456
      %458 = vrot.lane.b32.xlu0 %v340, 64
      %v459 = vpop.permute.xlu0 %458
      %460 = vrot.lane.b32.xlu0 %v341, 64
      %v461 = vpop.permute.xlu0 %460
      %462 = vrot.lane.b32.xlu0 %v342, 64
      %v463 = vpop.permute.xlu0 %462
      %464 = vrot.lane.b32.xlu0 %v343, 64
      %v465 = vpop.permute.xlu0 %464
      %466 = vrot.lane.b32.xlu0 %v344, 64
      %v467 = vpop.permute.xlu0 %466
      %468 = vrot.lane.b32.xlu0 %v345, 64
      %v469 = vpop.permute.xlu0 %468
      %470 = vrot.lane.b32.xlu0 %v346, 64
      %v471 = vpop.permute.xlu0 %470
      %472 = vrot.lane.b32.xlu0 %v347, 64
      %v473 = vpop.permute.xlu0 %472
      %474 = vrot.lane.b32.xlu0 %v348, 64
      %v475 = vpop.permute.xlu0 %474
      %476 = vrot.lane.b32.xlu0 %v349, 64
      %v477 = vpop.permute.xlu0 %476
      %478 = vrot.lane.b32.xlu0 %v350, 64
      %v479 = vpop.permute.xlu0 %478
      %480 = vrot.lane.b32.xlu0 %v435, 64
      %v481 = vpop.permute.xlu0 %480
      %482 = vrot.lane.b32.xlu0 %v436, 64
      %v483 = vpop.permute.xlu0 %482
      %484 = vrot.lane.b32.xlu0 %v437, 64
      %v485 = vpop.permute.xlu0 %484
      %vm486 = vcmask 261120
      %v489 = vsel %vm486, %v327, %v382
      %v492 = vsel %vm486, %v328, %v384
      %v495 = vsel %vm486, %v329, %v386
      %v498 = vsel %vm486, %v330, %v388
      %v501 = vsel %vm486, %v331, %v390
      %v504 = vsel %vm486, %v332, %v392
      %v507 = vsel %vm486, %v333, %v394
      %v510 = vsel %vm486, %v334, %v396
      %v513 = vsel %vm486, %v335, %v398
      %v516 = vsel %vm486, %v336, %v400
      %v519 = vsel %vm486, %v337, %v402
      %v522 = vsel %vm486, %v338, %v404
      %v525 = vsel %vm486, %v339, %v406
      %v528 = vsel %vm486, %v340, %v408
      %v531 = vsel %vm486, %v341, %v410
      %v534 = vsel %vm486, %v342, %v412
      %v537 = vsel %vm486, %v343, %v414
      %v540 = vsel %vm486, %v344, %v416
      %v543 = vsel %vm486, %v345, %v418
      %v546 = vsel %vm486, %v346, %v420
      %v549 = vsel %vm486, %v347, %v422
      %v552 = vsel %vm486, %v348, %v424
      %v555 = vsel %vm486, %v349, %v426
      %v558 = vsel %vm486, %v350, %v428
      %vm559 = vcmask 523264
      %v561 = vsel %vm559, %v489, %v439
      %v563 = vsel %vm559, %v492, %v441
      %v565 = vsel %vm559, %v495, %v443
      %v567 = vsel %vm559, %v498, %v445
      %v569 = vsel %vm559, %v501, %v447
      %v571 = vsel %vm559, %v504, %v449
      %v573 = vsel %vm559, %v507, %v451
      %v575 = vsel %vm559, %v510, %v453
      %v577 = vsel %vm559, %v513, %v455
      %v579 = vsel %vm559, %v516, %v457
      %v581 = vsel %vm559, %v519, %v459
      %v583 = vsel %vm559, %v522, %v461
      %v585 = vsel %vm559, %v525, %v463
      %v587 = vsel %vm559, %v528, %v465
      %v589 = vsel %vm559, %v531, %v467
      %v591 = vsel %vm559, %v534, %v469
      %v593 = vsel %vm559, %v537, %v471
      %v595 = vsel %vm559, %v540, %v473
      %v597 = vsel %vm559, %v543, %v475
      %v599 = vsel %vm559, %v546, %v477
      %v601 = vsel %vm559, %v549, %v479
      %v603 = vsel %vm559, %v552, %v481
      %v605 = vsel %vm559, %v555, %v483
      %v607 = vsel %vm559, %v558, %v485
      %v608 = vld [vmem:[%s1] sm:$0xff]
      %v609 = vld [vmem:[%s1 + $0x8] sm:$0xff]
      %v610 = vld [vmem:[%s1 + $0x10] sm:$0xff]
      %v611 = vld [vmem:[%s1 + $0x18] sm:$0xff]
      %v612 = vld [vmem:[%s1 + $0x20] sm:$0xff]
      %v613 = vld [vmem:[%s1 + $0x28] sm:$0xff]
      %v614 = vld [vmem:[%s1 + $0x30] sm:$0xff]
      %v615 = vld [vmem:[%s1 + $0x38] sm:$0xff]
      %v616 = vld [vmem:[%s1 + $0x40] sm:$0xff]
      %v617 = vld [vmem:[%s1 + $0x48] sm:$0xff]
      %v618 = vld [vmem:[%s1 + $0x50] sm:$0xff]
      %v619 = vld [vmem:[%s1 + $0x58] sm:$0xff]
      %v632 = vunpack.c.l.b16 %v608
      %v633 = vunpack.c.h.b16 %v608
      %v634 = vunpack.c.l.b16 %v609
      %v635 = vunpack.c.h.b16 %v609
      %v636 = vunpack.c.l.b16 %v610
      %v637 = vunpack.c.h.b16 %v610
      %v638 = vunpack.c.l.b16 %v611
      %v639 = vunpack.c.h.b16 %v611
      %v640 = vunpack.c.l.b16 %v612
      %v641 = vunpack.c.h.b16 %v612
      %v642 = vunpack.c.l.b16 %v613
      %v643 = vunpack.c.h.b16 %v613
      %v644 = vunpack.c.l.b16 %v614
      %v645 = vunpack.c.h.b16 %v614
      %v646 = vunpack.c.l.b16 %v615
      %v647 = vunpack.c.h.b16 %v615
      %v648 = vunpack.c.l.b16 %v616
      %v649 = vunpack.c.h.b16 %v616
      %v650 = vunpack.c.l.b16 %v617
      %v651 = vunpack.c.h.b16 %v617
      %v652 = vunpack.c.l.b16 %v618
      %v653 = vunpack.c.h.b16 %v618
      %v654 = vunpack.c.l.b16 %v619
      %v655 = vunpack.c.h.b16 %v619
      %v656 = vpack.c.b16 %v634, %v632
      %v657 = vpack.c.b16 %v635, %v633
      %v658 = vpack.c.b16 %v638, %v636
      %v659 = vpack.c.b16 %v639, %v637
      %v660 = vpack.c.b16 %v642, %v640
      %v661 = vpack.c.b16 %v643, %v641
      %v662 = vpack.c.b16 %v646, %v644
      %v663 = vpack.c.b16 %v647, %v645
      %v664 = vpack.c.b16 %v650, %v648
      %v665 = vpack.c.b16 %v651, %v649
      %v666 = vpack.c.b16 %v654, %v652
      %v667 = vpack.c.b16 %v655, %v653
      %vm680 = vcmask 785408
      %v681 = vsel %vm680, %v561, 0
      %v683 = vsel %vm680, %v563, 0
      %v685 = vsel %vm680, %v565, 0
      %v687 = vsel %vm680, %v567, 0
      %v689 = vsel %vm680, %v569, 0
      %v691 = vsel %vm680, %v571, 0
      %v693 = vsel %vm680, %v573, 0
      %v695 = vsel %vm680, %v575, 0
      %v697 = vsel %vm680, %v577, 0
      %v699 = vsel %vm680, %v579, 0
      %v701 = vsel %vm680, %v581, 0
      %v703 = vsel %vm680, %v583, 0
      %v705 = vsel %vm680, %v585, 0
      %v707 = vsel %vm680, %v587, 0
      %v709 = vsel %vm680, %v589, 0
      %v711 = vsel %vm680, %v591, 0
      %v713 = vsel %vm680, %v593, 0
      %v715 = vsel %vm680, %v595, 0
      %v717 = vsel %vm680, %v597, 0
      %v719 = vsel %vm680, %v599, 0
      %v721 = vsel %vm680, %v601, 0
      %v723 = vsel %vm680, %v603, 0
      %v725 = vsel %vm680, %v605, 0
      %v727 = vsel %vm680, %v607, 0
      %729 = vmatpush.bf16.msra.mxu0 0
      %730 = vmatpush.bf16.msra.mxu0 0
      %731 = vmatpush.bf16.msra.mxu0 %v666
      %732 = vmatpush.bf16.msra.mxu0 %v664
      %733 = vmatpush.bf16.msra.mxu0 %v662
      %734 = vmatpush.bf16.msra.mxu0 %v660
      %735 = vmatpush.bf16.msra.mxu0 %v658
      %736 = vmatpush.bf16.msra.mxu0 %v656
      %737 = vmatmul.bf16.gmra.mxu0 %v681
      %v738 = vpop.f32.mrf.mxu0
      %v739 = vadd.f32 0.0, %v738
      %v740 = vpop.f32.mrf.mxu0
      %v741 = vadd.f32 0.0, %v740
      %742 = vmatmul.bf16.gmra.mxu0 %v683
      %v743 = vpop.f32.mrf.mxu0
      %v744 = vadd.f32 0.0, %v743
      %v745 = vpop.f32.mrf.mxu0
      %v746 = vadd.f32 0.0, %v745
      %747 = vmatmul.bf16.gmra.mxu0 %v685
      %v748 = vpop.f32.mrf.mxu0
      %v749 = vadd.f32 0.0, %v748
      %v750 = vpop.f32.mrf.mxu0
      %v751 = vadd.f32 0.0, %v750
      %752 = vmatmul.bf16.gmra.mxu0 %v687
      %v753 = vpop.f32.mrf.mxu0
      %v754 = vadd.f32 0.0, %v753
      %v755 = vpop.f32.mrf.mxu0
      %v756 = vadd.f32 0.0, %v755
      %757 = vmatmul.bf16.gmra.mxu0 %v689
      %v758 = vpop.f32.mrf.mxu0
      %v759 = vadd.f32 0.0, %v758
      %v760 = vpop.f32.mrf.mxu0
      %v761 = vadd.f32 0.0, %v760
      %762 = vmatmul.bf16.gmra.mxu0 %v691
      %v763 = vpop.f32.mrf.mxu0
      %v764 = vadd.f32 0.0, %v763
      %v765 = vpop.f32.mrf.mxu0
      %v766 = vadd.f32 0.0, %v765
      %767 = vmatmul.bf16.gmra.mxu0 %v693
      %v768 = vpop.f32.mrf.mxu0
      %v769 = vadd.f32 0.0, %v768
      %v770 = vpop.f32.mrf.mxu0
      %v771 = vadd.f32 0.0, %v770
      %772 = vmatmul.bf16.gmra.mxu0 %v695
      %v773 = vpop.f32.mrf.mxu0
      %v774 = vadd.f32 0.0, %v773
      %v775 = vpop.f32.mrf.mxu0
      %v776 = vadd.f32 0.0, %v775
      %777 = vmatmul.bf16.gmra.mxu0 %v697
      %v778 = vpop.f32.mrf.mxu0
      %v779 = vadd.f32 0.0, %v778
      %v780 = vpop.f32.mrf.mxu0
      %v781 = vadd.f32 0.0, %v780
      %782 = vmatmul.bf16.gmra.mxu0 %v699
      %v783 = vpop.f32.mrf.mxu0
      %v784 = vadd.f32 0.0, %v783
      %v785 = vpop.f32.mrf.mxu0
      %v786 = vadd.f32 0.0, %v785
      %787 = vmatmul.bf16.gmra.mxu0 %v701
      %v788 = vpop.f32.mrf.mxu0
      %v789 = vadd.f32 0.0, %v788
      %v790 = vpop.f32.mrf.mxu0
      %v791 = vadd.f32 0.0, %v790
      %792 = vmatmul.bf16.gmra.mxu0 %v703
      %v793 = vpop.f32.mrf.mxu0
      %v794 = vadd.f32 0.0, %v793
      %v795 = vpop.f32.mrf.mxu0
      %v796 = vadd.f32 0.0, %v795
      %797 = vmatmul.bf16.gmra.mxu0 %v705
      %v798 = vpop.f32.mrf.mxu0
      %v799 = vadd.f32 0.0, %v798
      %v800 = vpop.f32.mrf.mxu0
      %v801 = vadd.f32 0.0, %v800
      %802 = vmatmul.bf16.gmra.mxu0 %v707
      %v803 = vpop.f32.mrf.mxu0
      %v804 = vadd.f32 0.0, %v803
      %v805 = vpop.f32.mrf.mxu0
      %v806 = vadd.f32 0.0, %v805
      %807 = vmatmul.bf16.gmra.mxu0 %v709
      %v808 = vpop.f32.mrf.mxu0
      %v809 = vadd.f32 0.0, %v808
      %v810 = vpop.f32.mrf.mxu0
      %v811 = vadd.f32 0.0, %v810
      %812 = vmatmul.bf16.gmra.mxu0 %v711
      %v813 = vpop.f32.mrf.mxu0
      %v814 = vadd.f32 0.0, %v813
      %v815 = vpop.f32.mrf.mxu0
      %v816 = vadd.f32 0.0, %v815
      %817 = vmatmul.bf16.gmra.mxu0 %v713
      %v818 = vpop.f32.mrf.mxu0
      %v819 = vadd.f32 0.0, %v818
      %v820 = vpop.f32.mrf.mxu0
      %v821 = vadd.f32 0.0, %v820
      %822 = vmatmul.bf16.gmra.mxu0 %v715
      %v823 = vpop.f32.mrf.mxu0
      %v824 = vadd.f32 0.0, %v823
      %v825 = vpop.f32.mrf.mxu0
      %v826 = vadd.f32 0.0, %v825
      %827 = vmatmul.bf16.gmra.mxu0 %v717
      %v828 = vpop.f32.mrf.mxu0
      %v829 = vadd.f32 0.0, %v828
      %v830 = vpop.f32.mrf.mxu0
      %v831 = vadd.f32 0.0, %v830
      %832 = vmatmul.bf16.gmra.mxu0 %v719
      %v833 = vpop.f32.mrf.mxu0
      %v834 = vadd.f32 0.0, %v833
      %v835 = vpop.f32.mrf.mxu0
      %v836 = vadd.f32 0.0, %v835
      %837 = vmatmul.bf16.gmra.mxu0 %v721
      %v838 = vpop.f32.mrf.mxu0
      %v839 = vadd.f32 0.0, %v838
      %v840 = vpop.f32.mrf.mxu0
      %v841 = vadd.f32 0.0, %v840
      %842 = vmatmul.bf16.gmra.mxu0 %v723
      %v843 = vpop.f32.mrf.mxu0
      %v844 = vadd.f32 0.0, %v843
      %v845 = vpop.f32.mrf.mxu0
      %v846 = vadd.f32 0.0, %v845
      %847 = vmatmul.bf16.gmra.mxu0 %v725
      %v848 = vpop.f32.mrf.mxu0
      %v849 = vadd.f32 0.0, %v848
      %v850 = vpop.f32.mrf.mxu0
      %v851 = vadd.f32 0.0, %v850
      %852 = vmatmul.bf16.gmra.mxu0 %v727
      %v853 = vpop.f32.mrf.mxu0
      %v854 = vadd.f32 0.0, %v853
      %v855 = vpop.f32.mrf.mxu0
      %v856 = vadd.f32 0.0, %v855
      %857 = vdwg.mxu0
      %858 = vmatpush.bf16.msra.mxu0 0
      %859 = vmatpush.bf16.msra.mxu0 0
      %860 = vmatpush.bf16.msra.mxu0 %v667
      %861 = vmatpush.bf16.msra.mxu0 %v665
      %862 = vmatpush.bf16.msra.mxu0 %v663
      %863 = vmatpush.bf16.msra.mxu0 %v661
      %864 = vmatpush.bf16.msra.mxu0 %v659
      %865 = vmatpush.bf16.msra.mxu0 %v657
      %866 = vmatmul.bf16.gmra.mxu0 %v681
      %v867 = vpop.f32.mrf.mxu0
      %v868 = vadd.f32 0.0, %v867
      %v869 = vpop.f32.mrf.mxu0
      %v870 = vadd.f32 0.0, %v869
      %871 = vmatmul.bf16.gmra.mxu0 %v683
      %v872 = vpop.f32.mrf.mxu0
      %v873 = vadd.f32 0.0, %v872
      %v874 = vpop.f32.mrf.mxu0
      %v875 = vadd.f32 0.0, %v874
      %876 = vmatmul.bf16.gmra.mxu0 %v685
      %v877 = vpop.f32.mrf.mxu0
      %v878 = vadd.f32 0.0, %v877
      %v879 = vpop.f32.mrf.mxu0
      %v880 = vadd.f32 0.0, %v879
      %881 = vmatmul.bf16.gmra.mxu0 %v687
      %v882 = vpop.f32.mrf.mxu0
      %v883 = vadd.f32 0.0, %v882
      %v884 = vpop.f32.mrf.mxu0
      %v885 = vadd.f32 0.0, %v884
      %886 = vmatmul.bf16.gmra.mxu0 %v689
      %v887 = vpop.f32.mrf.mxu0
      %v888 = vadd.f32 0.0, %v887
      %v889 = vpop.f32.mrf.mxu0
      %v890 = vadd.f32 0.0, %v889
      %891 = vmatmul.bf16.gmra.mxu0 %v691
      %v892 = vpop.f32.mrf.mxu0
      %v893 = vadd.f32 0.0, %v892
      %v894 = vpop.f32.mrf.mxu0
      %v895 = vadd.f32 0.0, %v894
      %896 = vmatmul.bf16.gmra.mxu0 %v693
      %v897 = vpop.f32.mrf.mxu0
      %v898 = vadd.f32 0.0, %v897
      %v899 = vpop.f32.mrf.mxu0
      %v900 = vadd.f32 0.0, %v899
      %901 = vmatmul.bf16.gmra.mxu0 %v695
      %v902 = vpop.f32.mrf.mxu0
      %v903 = vadd.f32 0.0, %v902
      %v904 = vpop.f32.mrf.mxu0
      %v905 = vadd.f32 0.0, %v904
      %906 = vmatmul.bf16.gmra.mxu0 %v697
      %v907 = vpop.f32.mrf.mxu0
      %v908 = vadd.f32 0.0, %v907
      %v909 = vpop.f32.mrf.mxu0
      %v910 = vadd.f32 0.0, %v909
      %911 = vmatmul.bf16.gmra.mxu0 %v699
      %v912 = vpop.f32.mrf.mxu0
      %v913 = vadd.f32 0.0, %v912
      %v914 = vpop.f32.mrf.mxu0
      %v915 = vadd.f32 0.0, %v914
      %916 = vmatmul.bf16.gmra.mxu0 %v701
      %v917 = vpop.f32.mrf.mxu0
      %v918 = vadd.f32 0.0, %v917
      %v919 = vpop.f32.mrf.mxu0
      %v920 = vadd.f32 0.0, %v919
      %921 = vmatmul.bf16.gmra.mxu0 %v703
      %v922 = vpop.f32.mrf.mxu0
      %v923 = vadd.f32 0.0, %v922
      %v924 = vpop.f32.mrf.mxu0
      %v925 = vadd.f32 0.0, %v924
      %926 = vmatmul.bf16.gmra.mxu0 %v705
      %v927 = vpop.f32.mrf.mxu0
      %v928 = vadd.f32 0.0, %v927
      %v929 = vpop.f32.mrf.mxu0
      %v930 = vadd.f32 0.0, %v929
      %931 = vmatmul.bf16.gmra.mxu0 %v707
      %v932 = vpop.f32.mrf.mxu0
      %v933 = vadd.f32 0.0, %v932
      %v934 = vpop.f32.mrf.mxu0
      %v935 = vadd.f32 0.0, %v934
      %936 = vmatmul.bf16.gmra.mxu0 %v709
      %v937 = vpop.f32.mrf.mxu0
      %v938 = vadd.f32 0.0, %v937
      %v939 = vpop.f32.mrf.mxu0
      %v940 = vadd.f32 0.0, %v939
      %941 = vmatmul.bf16.gmra.mxu0 %v711
      %v942 = vpop.f32.mrf.mxu0
      %v943 = vadd.f32 0.0, %v942
      %v944 = vpop.f32.mrf.mxu0
      %v945 = vadd.f32 0.0, %v944
      %946 = vmatmul.bf16.gmra.mxu0 %v713
      %v947 = vpop.f32.mrf.mxu0
      %v948 = vadd.f32 0.0, %v947
      %v949 = vpop.f32.mrf.mxu0
      %v950 = vadd.f32 0.0, %v949
      %951 = vmatmul.bf16.gmra.mxu0 %v715
      %v952 = vpop.f32.mrf.mxu0
      %v953 = vadd.f32 0.0, %v952
      %v954 = vpop.f32.mrf.mxu0
      %v955 = vadd.f32 0.0, %v954
      %956 = vmatmul.bf16.gmra.mxu0 %v717
      %v957 = vpop.f32.mrf.mxu0
      %v958 = vadd.f32 0.0, %v957
      %v959 = vpop.f32.mrf.mxu0
      %v960 = vadd.f32 0.0, %v959
      %961 = vmatmul.bf16.gmra.mxu0 %v719
      %v962 = vpop.f32.mrf.mxu0
      %v963 = vadd.f32 0.0, %v962
      %v964 = vpop.f32.mrf.mxu0
      %v965 = vadd.f32 0.0, %v964
      %966 = vmatmul.bf16.gmra.mxu0 %v721
      %v967 = vpop.f32.mrf.mxu0
      %v968 = vadd.f32 0.0, %v967
      %v969 = vpop.f32.mrf.mxu0
      %v970 = vadd.f32 0.0, %v969
      %971 = vmatmul.bf16.gmra.mxu0 %v723
      %v972 = vpop.f32.mrf.mxu0
      %v973 = vadd.f32 0.0, %v972
      %v974 = vpop.f32.mrf.mxu0
      %v975 = vadd.f32 0.0, %v974
      %976 = vmatmul.bf16.gmra.mxu0 %v725
      %v977 = vpop.f32.mrf.mxu0
      %v978 = vadd.f32 0.0, %v977
      %v979 = vpop.f32.mrf.mxu0
      %v980 = vadd.f32 0.0, %v979
      %981 = vmatmul.bf16.gmra.mxu0 %v727
      %v982 = vpop.f32.mrf.mxu0
      %v983 = vadd.f32 0.0, %v982
      %v984 = vpop.f32.mrf.mxu0
      %v985 = vadd.f32 0.0, %v984
      %986 = vdwg.mxu0
      %1035 = vrot.lane.b32.xlu0 %v739, 64
      %v1036 = vpop.permute.xlu0 %1035
      %1037 = vrot.lane.b32.xlu0 %v741, 64
      %v1038 = vpop.permute.xlu0 %1037
      %1039 = vrot.lane.b32.xlu0 %v744, 64
      %v1040 = vpop.permute.xlu0 %1039
      %1041 = vrot.lane.b32.xlu0 %v746, 64
      %v1042 = vpop.permute.xlu0 %1041
      %1043 = vrot.lane.b32.xlu0 %v749, 64
      %v1044 = vpop.permute.xlu0 %1043
      %1045 = vrot.lane.b32.xlu0 %v751, 64
      %v1046 = vpop.permute.xlu0 %1045
      %1047 = vrot.lane.b32.xlu0 %v754, 64
      %v1048 = vpop.permute.xlu0 %1047
      %1049 = vrot.lane.b32.xlu0 %v756, 64
      %v1050 = vpop.permute.xlu0 %1049
      %1051 = vrot.lane.b32.xlu0 %v759, 64
      %v1052 = vpop.permute.xlu0 %1051
      %1053 = vrot.lane.b32.xlu0 %v761, 64
      %v1054 = vpop.permute.xlu0 %1053
      %1055 = vrot.lane.b32.xlu0 %v764, 64
      %v1056 = vpop.permute.xlu0 %1055
      %1057 = vrot.lane.b32.xlu0 %v766, 64
      %v1058 = vpop.permute.xlu0 %1057
      %1059 = vrot.lane.b32.xlu0 %v769, 64
      %v1060 = vpop.permute.xlu0 %1059
      %1061 = vrot.lane.b32.xlu0 %v771, 64
      %v1062 = vpop.permute.xlu0 %1061
      %1063 = vrot.lane.b32.xlu0 %v774, 64
      %v1064 = vpop.permute.xlu0 %1063
      %1065 = vrot.lane.b32.xlu0 %v776, 64
      %v1066 = vpop.permute.xlu0 %1065
      %1067 = vrot.lane.b32.xlu0 %v779, 64
      %v1068 = vpop.permute.xlu0 %1067
      %1069 = vrot.lane.b32.xlu0 %v781, 64
      %v1070 = vpop.permute.xlu0 %1069
      %1071 = vrot.lane.b32.xlu0 %v784, 64
      %v1072 = vpop.permute.xlu0 %1071
      %1073 = vrot.lane.b32.xlu0 %v786, 64
      %v1074 = vpop.permute.xlu0 %1073
      %1075 = vrot.lane.b32.xlu0 %v789, 64
      %v1076 = vpop.permute.xlu0 %1075
      %1077 = vrot.lane.b32.xlu0 %v791, 64
      %v1078 = vpop.permute.xlu0 %1077
      %1079 = vrot.lane.b32.xlu0 %v794, 64
      %v1080 = vpop.permute.xlu0 %1079
      %1081 = vrot.lane.b32.xlu0 %v796, 64
      %v1082 = vpop.permute.xlu0 %1081
      %1083 = vrot.lane.b32.xlu0 %v799, 64
      %v1084 = vpop.permute.xlu0 %1083
      %1085 = vrot.lane.b32.xlu0 %v801, 64
      %v1086 = vpop.permute.xlu0 %1085
      %1087 = vrot.lane.b32.xlu0 %v804, 64
      %v1088 = vpop.permute.xlu0 %1087
      %1089 = vrot.lane.b32.xlu0 %v806, 64
      %v1090 = vpop.permute.xlu0 %1089
      %1091 = vrot.lane.b32.xlu0 %v809, 64
      %v1092 = vpop.permute.xlu0 %1091
      %1093 = vrot.lane.b32.xlu0 %v811, 64
      %v1094 = vpop.permute.xlu0 %1093
      %1095 = vrot.lane.b32.xlu0 %v814, 64
      %v1096 = vpop.permute.xlu0 %1095
      %1097 = vrot.lane.b32.xlu0 %v816, 64
      %v1098 = vpop.permute.xlu0 %1097
      %1099 = vrot.lane.b32.xlu0 %v819, 64
      %v1100 = vpop.permute.xlu0 %1099
      %1101 = vrot.lane.b32.xlu0 %v821, 64
      %v1102 = vpop.permute.xlu0 %1101
      %1103 = vrot.lane.b32.xlu0 %v824, 64
      %v1104 = vpop.permute.xlu0 %1103
      %1105 = vrot.lane.b32.xlu0 %v826, 64
      %v1106 = vpop.permute.xlu0 %1105
      %1107 = vrot.lane.b32.xlu0 %v829, 64
      %v1108 = vpop.permute.xlu0 %1107
      %1109 = vrot.lane.b32.xlu0 %v831, 64
      %v1110 = vpop.permute.xlu0 %1109
      %1111 = vrot.lane.b32.xlu0 %v834, 64
      %v1112 = vpop.permute.xlu0 %1111
      %1113 = vrot.lane.b32.xlu0 %v836, 64
      %v1114 = vpop.permute.xlu0 %1113
      %1115 = vrot.lane.b32.xlu0 %v839, 64
      %v1116 = vpop.permute.xlu0 %1115
      %1117 = vrot.lane.b32.xlu0 %v841, 64
      %v1118 = vpop.permute.xlu0 %1117
      %1119 = vrot.lane.b32.xlu0 %v844, 64
      %v1120 = vpop.permute.xlu0 %1119
      %1121 = vrot.lane.b32.xlu0 %v846, 64
      %v1122 = vpop.permute.xlu0 %1121
      %1123 = vrot.lane.b32.xlu0 %v849, 64
      %v1124 = vpop.permute.xlu0 %1123
      %1125 = vrot.lane.b32.xlu0 %v851, 64
      %v1126 = vpop.permute.xlu0 %1125
      %1127 = vrot.lane.b32.xlu0 %v854, 64
      %v1128 = vpop.permute.xlu0 %1127
      %1129 = vrot.lane.b32.xlu0 %v856, 64
      %v1130 = vpop.permute.xlu0 %1129
      %v1179 = vrot.slane %v1036, 1
      %v1180 = vrot.slane %v1038, 1
      %v1181 = vrot.slane %v1040, 1
      %v1182 = vrot.slane %v1042, 1
      %v1183 = vrot.slane %v1044, 1
      %v1184 = vrot.slane %v1046, 1
      %v1185 = vrot.slane %v1048, 1
      %v1186 = vrot.slane %v1050, 1
      %v1187 = vrot.slane %v1052, 1
      %v1188 = vrot.slane %v1054, 1
      %v1189 = vrot.slane %v1056, 1
      %v1190 = vrot.slane %v1058, 1
      %v1191 = vrot.slane %v1060, 1
      %v1192 = vrot.slane %v1062, 1
      %v1193 = vrot.slane %v1064, 1
      %v1194 = vrot.slane %v1066, 1
      %v1195 = vrot.slane %v1068, 1
      %v1196 = vrot.slane %v1070, 1
      %v1197 = vrot.slane %v1072, 1
      %v1198 = vrot.slane %v1074, 1
      %v1199 = vrot.slane %v1076, 1
      %v1200 = vrot.slane %v1078, 1
      %v1201 = vrot.slane %v1080, 1
      %v1202 = vrot.slane %v1082, 1
      %v1203 = vrot.slane %v1084, 1
      %v1204 = vrot.slane %v1086, 1
      %v1205 = vrot.slane %v1088, 1
      %v1206 = vrot.slane %v1090, 1
      %v1207 = vrot.slane %v1092, 1
      %v1208 = vrot.slane %v1094, 1
      %v1209 = vrot.slane %v1096, 1
      %v1210 = vrot.slane %v1098, 1
      %v1211 = vrot.slane %v1100, 1
      %v1212 = vrot.slane %v1102, 1
      %v1213 = vrot.slane %v1104, 1
      %v1214 = vrot.slane %v1106, 1
      %v1215 = vrot.slane %v1108, 1
      %v1216 = vrot.slane %v1110, 1
      %v1217 = vrot.slane %v1112, 1
      %v1218 = vrot.slane %v1114, 1
      %v1219 = vrot.slane %v1116, 1
      %v1220 = vrot.slane %v1118, 1
      %v1221 = vrot.slane %v1120, 1
      %v1222 = vrot.slane %v1122, 1
      %v1223 = vrot.slane %v1124, 1
      %v1224 = vrot.slane %v1126, 1
      %v1225 = vrot.slane %v1128, 1
      %v1226 = vrot.slane %v1130, 1
      %v1227 = vlaneseq
      %v1228 = vshrl.u32 %v1227, 7
      %vm1229 = vcmp.lt.s32.totalorder %v1228, 7
      %v1230 = vsel %vm1229, %v1225, %v1226
      %v1231 = vsel %vm1229, %v1224, %v1225
      %v1232 = vsel %vm1229, %v1222, %v1223
      %v1233 = vsel %vm1229, %v1221, %v1222
      %v1234 = vsel %vm1229, %v1219, %v1220
      %v1235 = vsel %vm1229, %v1218, %v1219
      %v1236 = vsel %vm1229, %v1216, %v1217
      %v1237 = vsel %vm1229, %v1215, %v1216
      %v1238 = vsel %vm1229, %v1213, %v1214
      %v1239 = vsel %vm1229, %v1212, %v1213
      %v1240 = vsel %vm1229, %v1210, %v1211
      %v1241 = vsel %vm1229, %v1209, %v1210
      %v1242 = vsel %vm1229, %v1207, %v1208
      %v1243 = vsel %vm1229, %v1206, %v1207
      %v1244 = vsel %vm1229, %v1204, %v1205
      %v1245 = vsel %vm1229, %v1203, %v1204
      %v1246 = vsel %vm1229, %v1201, %v1202
      %v1247 = vsel %vm1229, %v1200, %v1201
      %v1248 = vsel %vm1229, %v1198, %v1199
      %v1249 = vsel %vm1229, %v1197, %v1198
      %v1250 = vsel %vm1229, %v1195, %v1196
      %v1251 = vsel %vm1229, %v1194, %v1195
      %v1252 = vsel %vm1229, %v1192, %v1193
      %v1253 = vsel %vm1229, %v1191, %v1192
      %v1254 = vsel %vm1229, %v1189, %v1190
      %v1255 = vsel %vm1229, %v1188, %v1189
      %v1256 = vsel %vm1229, %v1186, %v1187
      %v1257 = vsel %vm1229, %v1185, %v1186
      %v1258 = vsel %vm1229, %v1183, %v1184
      %v1259 = vsel %vm1229, %v1182, %v1183
      %v1260 = vsel %vm1229, %v1180, %v1181
      %v1261 = vsel %vm1229, %v1179, %v1180
      %v1262 = vadd.f32 %v739, %v1261
      %v1263 = vadd.f32 %v741, %v1260
      %v1264 = vadd.f32 %v746, %v1259
      %v1265 = vadd.f32 %v749, %v1258
      %v1266 = vadd.f32 %v754, %v1257
      %v1267 = vadd.f32 %v756, %v1256
      %v1268 = vadd.f32 %v761, %v1255
      %v1269 = vadd.f32 %v764, %v1254
      %v1270 = vadd.f32 %v769, %v1253
      %v1271 = vadd.f32 %v771, %v1252
      %v1272 = vadd.f32 %v776, %v1251
      %v1273 = vadd.f32 %v779, %v1250
      %v1274 = vadd.f32 %v784, %v1249
      %v1275 = vadd.f32 %v786, %v1248
      %v1276 = vadd.f32 %v791, %v1247
      %v1277 = vadd.f32 %v794, %v1246
      %v1278 = vadd.f32 %v799, %v1245
      %v1279 = vadd.f32 %v801, %v1244
      %v1280 = vadd.f32 %v806, %v1243
      %v1281 = vadd.f32 %v809, %v1242
      %v1282 = vadd.f32 %v814, %v1241
      %v1283 = vadd.f32 %v816, %v1240
      %v1284 = vadd.f32 %v821, %v1239
      %v1285 = vadd.f32 %v824, %v1238
      %v1286 = vadd.f32 %v829, %v1237
      %v1287 = vadd.f32 %v831, %v1236
      %v1288 = vadd.f32 %v836, %v1235
      %v1289 = vadd.f32 %v839, %v1234
      %v1290 = vadd.f32 %v844, %v1233
      %v1291 = vadd.f32 %v846, %v1232
      %v1292 = vadd.f32 %v851, %v1231
      %v1293 = vadd.f32 %v854, %v1230
      %v1294 = vrot.slane %v868, 2
      %v1295 = vrot.slane %v870, 2
      %v1296 = vrot.slane %v873, 2
      %v1297 = vrot.slane %v875, 2
      %v1298 = vrot.slane %v878, 2
      %v1299 = vrot.slane %v880, 2
      %v1300 = vrot.slane %v883, 2
      %v1301 = vrot.slane %v885, 2
      %v1302 = vrot.slane %v888, 2
      %v1303 = vrot.slane %v890, 2
      %v1304 = vrot.slane %v893, 2
      %v1305 = vrot.slane %v895, 2
      %v1306 = vrot.slane %v898, 2
      %v1307 = vrot.slane %v900, 2
      %v1308 = vrot.slane %v903, 2
      %v1309 = vrot.slane %v905, 2
      %v1310 = vrot.slane %v908, 2
      %v1311 = vrot.slane %v910, 2
      %v1312 = vrot.slane %v913, 2
      %v1313 = vrot.slane %v915, 2
      %v1314 = vrot.slane %v918, 2
      %v1315 = vrot.slane %v920, 2
      %v1316 = vrot.slane %v923, 2
      %v1317 = vrot.slane %v925, 2
      %v1318 = vrot.slane %v928, 2
      %v1319 = vrot.slane %v930, 2
      %v1320 = vrot.slane %v933, 2
      %v1321 = vrot.slane %v935, 2
      %v1322 = vrot.slane %v938, 2
      %v1323 = vrot.slane %v940, 2
      %v1324 = vrot.slane %v943, 2
      %v1325 = vrot.slane %v945, 2
      %v1326 = vrot.slane %v948, 2
      %v1327 = vrot.slane %v950, 2
      %v1328 = vrot.slane %v953, 2
      %v1329 = vrot.slane %v955, 2
      %v1330 = vrot.slane %v958, 2
      %v1331 = vrot.slane %v960, 2
      %v1332 = vrot.slane %v963, 2
      %v1333 = vrot.slane %v965, 2
      %v1334 = vrot.slane %v968, 2
      %v1335 = vrot.slane %v970, 2
      %v1336 = vrot.slane %v973, 2
      %v1337 = vrot.slane %v975, 2
      %v1338 = vrot.slane %v978, 2
      %v1339 = vrot.slane %v980, 2
      %v1340 = vrot.slane %v983, 2
      %v1341 = vrot.slane %v985, 2
      %vm1342 = vcmp.lt.s32.totalorder %v1228, 6
      %v1343 = vsel %vm1342, %v1340, %v1341
      %v1344 = vsel %vm1342, %v1339, %v1340
      %v1345 = vsel %vm1342, %v1337, %v1338
      %v1346 = vsel %vm1342, %v1336, %v1337
      %v1347 = vsel %vm1342, %v1334, %v1335
      %v1348 = vsel %vm1342, %v1333, %v1334
      %v1349 = vsel %vm1342, %v1331, %v1332
      %v1350 = vsel %vm1342, %v1330, %v1331
      %v1351 = vsel %vm1342, %v1328, %v1329
      %v1352 = vsel %vm1342, %v1327, %v1328
      %v1353 = vsel %vm1342, %v1325, %v1326
      %v1354 = vsel %vm1342, %v1324, %v1325
      %v1355 = vsel %vm1342, %v1322, %v1323
      %v1356 = vsel %vm1342, %v1321, %v1322
      %v1357 = vsel %vm1342, %v1319, %v1320
      %v1358 = vsel %vm1342, %v1318, %v1319
      %v1359 = vsel %vm1342, %v1316, %v1317
      %v1360 = vsel %vm1342, %v1315, %v1316
      %v1361 = vsel %vm1342, %v1313, %v1314
      %v1362 = vsel %vm1342, %v1312, %v1313
      %v1363 = vsel %vm1342, %v1310, %v1311
      %v1364 = vsel %vm1342, %v1309, %v1310
      %v1365 = vsel %vm1342, %v1307, %v1308
      %v1366 = vsel %vm1342, %v1306, %v1307
      %v1367 = vsel %vm1342, %v1304, %v1305
      %v1368 = vsel %vm1342, %v1303, %v1304
      %v1369 = vsel %vm1342, %v1301, %v1302
      %v1370 = vsel %vm1342, %v1300, %v1301
      %v1371 = vsel %vm1342, %v1298, %v1299
      %v1372 = vsel %vm1342, %v1297, %v1298
      %v1373 = vsel %vm1342, %v1295, %v1296
      %v1374 = vsel %vm1342, %v1294, %v1295
      %v1375 = vadd.f32 %v1262, %v1374
      %v1376 = vadd.f32 %v1263, %v1373
      %v1377 = vadd.f32 %v1264, %v1372
      %v1378 = vadd.f32 %v1265, %v1371
      %v1379 = vadd.f32 %v1266, %v1370
      %v1380 = vadd.f32 %v1267, %v1369
      %v1381 = vadd.f32 %v1268, %v1368
      %v1382 = vadd.f32 %v1269, %v1367
      %v1383 = vadd.f32 %v1270, %v1366
      %v1384 = vadd.f32 %v1271, %v1365
      %v1385 = vadd.f32 %v1272, %v1364
      %v1386 = vadd.f32 %v1273, %v1363
      %v1387 = vadd.f32 %v1274, %v1362
      %v1388 = vadd.f32 %v1275, %v1361
      %v1389 = vadd.f32 %v1276, %v1360
      %v1390 = vadd.f32 %v1277, %v1359
      %v1391 = vadd.f32 %v1278, %v1358
      %v1392 = vadd.f32 %v1279, %v1357
      %v1393 = vadd.f32 %v1280, %v1356
      %v1394 = vadd.f32 %v1281, %v1355
      %v1395 = vadd.f32 %v1282, %v1354
      %v1396 = vadd.f32 %v1283, %v1353
      %v1397 = vadd.f32 %v1284, %v1352
      %v1398 = vadd.f32 %v1285, %v1351
      %v1399 = vadd.f32 %v1286, %v1350
      %v1400 = vadd.f32 %v1287, %v1349
      %v1401 = vadd.f32 %v1288, %v1348
      %v1402 = vadd.f32 %v1289, %v1347
      %v1403 = vadd.f32 %v1290, %v1346
      %v1404 = vadd.f32 %v1291, %v1345
      %v1405 = vadd.f32 %v1292, %v1344
      %v1406 = vadd.f32 %v1293, %v1343
      %v1407 = vsel %vm559, %v1375, 0.0
      %v1408 = vsel %vm559, %v1376, 0.0
      %v1409 = vadd.f32 %v1407, %v1408
      %v1410 = vsel %vm559, %v1377, 0.0
      %v1411 = vadd.f32 %v1409, %v1410
      %v1412 = vsel %vm559, %v1378, 0.0
      %v1413 = vadd.f32 %v1411, %v1412
      %v1414 = vsel %vm559, %v1379, 0.0
      %v1415 = vadd.f32 %v1413, %v1414
      %v1416 = vsel %vm559, %v1380, 0.0
      %v1417 = vadd.f32 %v1415, %v1416
      %v1418 = vsel %vm559, %v1381, 0.0
      %v1419 = vadd.f32 %v1417, %v1418
      %v1420 = vsel %vm559, %v1382, 0.0
      %v1421 = vadd.f32 %v1419, %v1420
      %v1422 = vsel %vm559, %v1383, 0.0
      %v1423 = vadd.f32 %v1421, %v1422
      %v1424 = vsel %vm559, %v1384, 0.0
      %v1425 = vadd.f32 %v1423, %v1424
      %v1426 = vsel %vm559, %v1385, 0.0
      %v1427 = vadd.f32 %v1425, %v1426
      %v1428 = vsel %vm559, %v1386, 0.0
      %v1429 = vadd.f32 %v1427, %v1428
      %v1430 = vsel %vm559, %v1387, 0.0
      %v1431 = vadd.f32 %v1429, %v1430
      %v1432 = vsel %vm559, %v1388, 0.0
      %v1433 = vadd.f32 %v1431, %v1432
      %v1434 = vsel %vm559, %v1389, 0.0
      %v1435 = vadd.f32 %v1433, %v1434
      %v1436 = vsel %vm559, %v1390, 0.0
      %v1437 = vadd.f32 %v1435, %v1436
      %v1438 = vsel %vm559, %v1391, 0.0
      %v1439 = vadd.f32 %v1437, %v1438
      %v1440 = vsel %vm559, %v1392, 0.0
      %v1441 = vadd.f32 %v1439, %v1440
      %v1442 = vsel %vm559, %v1393, 0.0
      %v1443 = vadd.f32 %v1441, %v1442
      %v1444 = vsel %vm559, %v1394, 0.0
      %v1445 = vadd.f32 %v1443, %v1444
      %v1446 = vsel %vm559, %v1395, 0.0
      %v1447 = vadd.f32 %v1445, %v1446
      %v1448 = vsel %vm559, %v1396, 0.0
      %v1449 = vadd.f32 %v1447, %v1448
      %v1450 = vsel %vm559, %v1397, 0.0
      %v1451 = vadd.f32 %v1449, %v1450
      %v1452 = vsel %vm559, %v1398, 0.0
      %v1453 = vadd.f32 %v1451, %v1452
      %v1454 = vsel %vm559, %v1399, 0.0
      %v1455 = vadd.f32 %v1453, %v1454
      %v1456 = vsel %vm559, %v1400, 0.0
      %v1457 = vadd.f32 %v1455, %v1456
      %v1458 = vsel %vm559, %v1401, 0.0
      %v1459 = vadd.f32 %v1457, %v1458
      %v1460 = vsel %vm559, %v1402, 0.0
      %v1461 = vadd.f32 %v1459, %v1460
      %v1462 = vsel %vm559, %v1403, 0.0
      %v1463 = vadd.f32 %v1461, %v1462
      %v1464 = vsel %vm559, %v1404, 0.0
      %v1465 = vadd.f32 %v1463, %v1464
      %v1466 = vsel %vm559, %v1405, 0.0
      %v1467 = vadd.f32 %v1465, %v1466
      %v1468 = vsel %vm559, %v1406, 0.0
      %v1469 = vadd.f32 %v1467, %v1468
      %v1470 = vrot.slane %v1469, 4
      %v1471 = vadd.f32 %v1469, %v1470
      %v1472 = vrot.slane %v1471, 2
      %v1473 = vadd.f32 %v1471, %v1472
      %v1474 = vrot.slane %v1473, 1
      %v1475 = vadd.f32 %v1473, %v1474
      %v1476 = vmul.f32 %v1375, %v1375
      %v1477 = vmul.f32 %v1376, %v1376
      %v1478 = vmul.f32 %v1377, %v1377
      %v1479 = vmul.f32 %v1378, %v1378
      %v1480 = vmul.f32 %v1379, %v1379
      %v1481 = vmul.f32 %v1380, %v1380
      %v1482 = vmul.f32 %v1381, %v1381
      %v1483 = vmul.f32 %v1382, %v1382
      %v1484 = vmul.f32 %v1383, %v1383
      %v1485 = vmul.f32 %v1384, %v1384
      %v1486 = vmul.f32 %v1385, %v1385
      %v1487 = vmul.f32 %v1386, %v1386
      %v1488 = vmul.f32 %v1387, %v1387
      %v1489 = vmul.f32 %v1388, %v1388
      %v1490 = vmul.f32 %v1389, %v1389
      %v1491 = vmul.f32 %v1390, %v1390
      %v1492 = vmul.f32 %v1391, %v1391
      %v1493 = vmul.f32 %v1392, %v1392
      %v1494 = vmul.f32 %v1393, %v1393
      %v1495 = vmul.f32 %v1394, %v1394
      %v1496 = vmul.f32 %v1395, %v1395
      %v1497 = vmul.f32 %v1396, %v1396
      %v1498 = vmul.f32 %v1397, %v1397
      %v1499 = vmul.f32 %v1398, %v1398
      %v1500 = vmul.f32 %v1399, %v1399
      %v1501 = vmul.f32 %v1400, %v1400
      %v1502 = vmul.f32 %v1401, %v1401
      %v1503 = vmul.f32 %v1402, %v1402
      %v1504 = vmul.f32 %v1403, %v1403
      %v1505 = vmul.f32 %v1404, %v1404
      %v1506 = vmul.f32 %v1405, %v1405
      %v1507 = vmul.f32 %v1406, %v1406
      %v1508 = vsel %vm559, %v1476, 0.0
      %v1509 = vsel %vm559, %v1477, 0.0
      %v1510 = vadd.f32 %v1508, %v1509
      %v1511 = vsel %vm559, %v1478, 0.0
      %v1512 = vadd.f32 %v1510, %v1511
      %v1513 = vsel %vm559, %v1479, 0.0
      %v1514 = vadd.f32 %v1512, %v1513
      %v1515 = vsel %vm559, %v1480, 0.0
      %v1516 = vadd.f32 %v1514, %v1515
      %v1517 = vsel %vm559, %v1481, 0.0
      %v1518 = vadd.f32 %v1516, %v1517
      %v1519 = vsel %vm559, %v1482, 0.0
      %v1520 = vadd.f32 %v1518, %v1519
      %v1521 = vsel %vm559, %v1483, 0.0
      %v1522 = vadd.f32 %v1520, %v1521
      %v1523 = vsel %vm559, %v1484, 0.0
      %v1524 = vadd.f32 %v1522, %v1523
      %v1525 = vsel %vm559, %v1485, 0.0
      %v1526 = vadd.f32 %v1524, %v1525
      %v1527 = vsel %vm559, %v1486, 0.0
      %v1528 = vadd.f32 %v1526, %v1527
      %v1529 = vsel %vm559, %v1487, 0.0
      %v1530 = vadd.f32 %v1528, %v1529
      %v1531 = vsel %vm559, %v1488, 0.0
      %v1532 = vadd.f32 %v1530, %v1531
      %v1533 = vsel %vm559, %v1489, 0.0
      %v1534 = vadd.f32 %v1532, %v1533
      %v1535 = vsel %vm559, %v1490, 0.0
      %v1536 = vadd.f32 %v1534, %v1535
      %v1537 = vsel %vm559, %v1491, 0.0
      %v1538 = vadd.f32 %v1536, %v1537
      %v1539 = vsel %vm559, %v1492, 0.0
      %v1540 = vadd.f32 %v1538, %v1539
      %v1541 = vsel %vm559, %v1493, 0.0
      %v1542 = vadd.f32 %v1540, %v1541
      %v1543 = vsel %vm559, %v1494, 0.0
      %v1544 = vadd.f32 %v1542, %v1543
      %v1545 = vsel %vm559, %v1495, 0.0
      %v1546 = vadd.f32 %v1544, %v1545
      %v1547 = vsel %vm559, %v1496, 0.0
      %v1548 = vadd.f32 %v1546, %v1547
      %v1549 = vsel %vm559, %v1497, 0.0
      %v1550 = vadd.f32 %v1548, %v1549
      %v1551 = vsel %vm559, %v1498, 0.0
      %v1552 = vadd.f32 %v1550, %v1551
      %v1553 = vsel %vm559, %v1499, 0.0
      %v1554 = vadd.f32 %v1552, %v1553
      %v1555 = vsel %vm559, %v1500, 0.0
      %v1556 = vadd.f32 %v1554, %v1555
      %v1557 = vsel %vm559, %v1501, 0.0
      %v1558 = vadd.f32 %v1556, %v1557
      %v1559 = vsel %vm559, %v1502, 0.0
      %v1560 = vadd.f32 %v1558, %v1559
      %v1561 = vsel %vm559, %v1503, 0.0
      %v1562 = vadd.f32 %v1560, %v1561
      %v1563 = vsel %vm559, %v1504, 0.0
      %v1564 = vadd.f32 %v1562, %v1563
      %v1565 = vsel %vm559, %v1505, 0.0
      %v1566 = vadd.f32 %v1564, %v1565
      %v1567 = vsel %vm559, %v1506, 0.0
      %v1568 = vadd.f32 %v1566, %v1567
      %v1569 = vsel %vm559, %v1507, 0.0
      %v1570 = vadd.f32 %v1568, %v1569
      %v1571 = vrot.slane %v1570, 4
      %v1572 = vadd.f32 %v1570, %v1571
      %v1573 = vrot.slane %v1572, 2
      %v1574 = vadd.f32 %v1572, %v1573
      %v1575 = vrot.slane %v1574, 1
      %v1576 = vadd.f32 %v1574, %v1575
      %vm1577 = vcmask 1040384
      %v1578 = vsel %vm1577, %v1475, %v1576
      %vm1579 = vcmask 517120
      %1580 = vst.msk [vmem:[%s175] sm:$0x3] %vm1579, %v1578
      %p1581 = scmp.lt.s32.totalorder %s17, 1
      %s1582 = scalar_select %p1581, %s17, 1
      %p1583 = scmp.lt.s32.totalorder %s18, 0
      %s1584 = scalar_select %p1583, %s18, 0
      %s1585 = sadd.s32 %s1584, %s1582
      %s1586 = smul.addr %s1585, 2
      %s1587 = scalar_lea.vmem %s2, %s1586
      // Predicated region
      $region29: #{downblock2d_forward.2} parent=27 // pred_check
        %p1588 = pneg %p94
      $region30: #{downblock2d_forward.2} parent=27 // pred_check_branch
        %1590 = sbr.rel (%p1588) target = $region32
      $region31: #{downblock2d_forward.2} parent=27 // pred_region
        _
      $region32: #{downblock2d_forward.2} parent=27 // pred_fallthru
        _
    $region28: #{downblock2d_forward.2} parent=5 // pred_fallthru
      _
    %p1591 = scmp.le.s32.totalorder 2, %s8
    // Predicated region
    $region33: #{downblock2d_forward.2} parent=5 // pred_check
      %p1592 = pneg %p1591
    $region34: #{downblock2d_forward.2} parent=5 // pred_check_branch
      %1594 = sbr.rel (%p1592) target = $region36
    $region35: #{downblock2d_forward.2} parent=5 // pred_region
      %s1595 = ssub.s32 %s8, 2
      // Predicated region
      $region37: #{downblock2d_forward.2} parent=35 // pred_check
        %p1596 = pneg %p100
      $region38: #{downblock2d_forward.2} parent=35 // pred_check_branch
        %1598 = sbr.rel (%p1596) target = $region40
      $region39: #{downblock2d_forward.2} parent=35 // pred_region
        %p1599 = scmp.lt.s32.totalorder %s19, 1
        %s1600 = scalar_select %p1599, %s19, 1
        %p1601 = scmp.lt.s32.totalorder %s20, 0
        %s1602 = scalar_select %p1601, %s20, 0
        %s1603 = sadd.s32 %s1602, %s1600
        %s1604 = smul.addr %s1603, 2
        %s1605 = scalar_lea.vmem %s2, %s1604
      $region40: #{downblock2d_forward.2} parent=35 // pred_fallthru
        _
    $region36: #{downblock2d_forward.2} parent=5 // pred_fallthru
      _
  $region6: #{downblock2d_forward.2} parent=0 // loop_footer
    %s12 = sadd.s32 1, %s8
  $region7: #{downblock2d_forward.2} parent=0 // loop_footer_branch
    %7 = sbr.rel target = $region3
  $region8: #{downblock2d_forward.2} parent=0 // loop_exit
    _

// kernel: downblock2d_forward.3
$region0: #{downblock2d_forward.3}
  #allocation0 [shape = 'u32[]', space=smem, size = 0x4, offset = 0x4, fixed_abs, tag = 'smem constant byte address 0x4 - core index']
  #allocation1 [shape = 'u32[72,128]{1,0:T(1,128)}', space=vmem, size = 0x9000, scoped, tag = 'internal scratch']
  #allocation2 [shape = 'f32[128,64]{1,0:T(8,128)}', space=vmem, size = 0x10000, scoped, tag = 'scratch operand']
  %s0 = inlined_call_operand.vmem [shape: bf16[2,1,432,32], index: 0, kind: input, shape index: {}]
  %s1 = inlined_call_operand.vmem [shape: bf16[96,192], index: 1, kind: input, shape index: {}]
  %s2 = inlined_call_operand.vmem [shape: f32[1,64], index: 2, kind: input, shape index: {}]
  %s3 = inlined_call_operand.vmem [shape: f32[1,64], index: 3, kind: input, shape index: {}]
  %s4 = inlined_call_operand.hbm [shape: f32[2,8,8,64], index: 4, kind: output, shape index: {}]
  %s5 = sld [smem:[#allocation0]]
  $region49: #{downblock2d_forward.3} parent=0
    _
  %s7 = ssub.s32 1, %s5
  %s8 = scalar_select 0, %s7, %s5
  $region1: #{downblock2d_forward.3} parent=0
    #allocation3 [shape = 'u8[65536]{0}', space=vmem, size = 0x10000, scoped, tag = 'output window, operand 0']
    #allocation4 [shape = 's32[2]{0}', space=sflag, size = 0x8, scoped, tag = 'scoped memory for downblock2d_forward.3']
    %9 = vsyncpa [#allocation4], 0
    %s10 = scalar_lea.sflag [#allocation4], 1
    %11 = vsyncpa %s10, 0
    loop: start=0, step=1, limit=4
    $region2: #{downblock2d_forward.3} parent=1 // loop_pre_header
      _
    $region3: #{downblock2d_forward.3} parent=1 // loop_header
      %s13 = sphi 0, %s17
      %p14 = scmp.ge.s32.totalorder %s13, 4
      %s20 = sphi 0, %s32
      %s21 = sphi 0, %s28
      %s22 = sphi 0, %s20
      %s23 = sphi 0, %s21
      %s24 = sphi 0, %s22
      %s25 = sphi 0, %s23
      %s37 = sphi 0, %s39
      %s40 = sphi 0, %s37
      %s41 = sphi 0, %s40
      %s57 = sphi 0, %s41
      %s61 = sphi 0, %s61
      %s63 = sphi 0, %s61
      %s64 = sphi 0, %s63
      %s78 = sphi 0, %s64
      %s82 = sphi 0, %s82
      %s84 = sphi 0, %s82
      %s85 = sphi 0, %s84
      %s99 = sphi 0, %s85
      %s103 = sphi 0, %s103
      %s105 = sphi 0, %s103
      %s106 = sphi 0, %s105
      %s120 = sphi 0, %s106
      %s128 = sphi 0, %s130
      %s131 = sphi 0, %s128
      %s132 = sphi 0, %s131
      %s148 = sphi 0, %s132
    $region4: #{downblock2d_forward.3} parent=1 // loop_header_branch
      %16 = sbr.rel (%p14) target = $region8
    $region5: #{downblock2d_forward.3} parent=1 // loop_body
      %s18 = ssub.s32 %s13, 1
      %s19 = ssub.s32 %s13, 2
      %s26 = sadd.s32 1, %s21
      %p27 = scmp.ge.s32.totalorder %s26, 1
      %s28 = scalar_select %p27, 0, %s26
      %s29 = sadd.s32 1, %s20
      %s30 = scalar_select %p27, %s29, %s20
      %p31 = scmp.ge.s32.totalorder %s30, 2
      %s32 = scalar_select %p31, 0, %s30
      %s33 = ssub.s32 %s20, %s32
      %s34 = ssub.s32 %s21, %s28
      %s35 = sor.u32 %s33, %s34
      %p36 = scmp.eq.s32.totalorder %s35, 0
      %s38 = sadd.s32 %s37, 1
      %s39 = scalar_select %p36, %s37, %s38
      %p42 = pneg %p36
      %p43 = scmp.eq.s32.totalorder %s13, 1
      %p44 = por %p42, %p43
      %p45 = scmp.ne.s32.totalorder %s37, %s40
      %p46 = scmp.eq.s32.totalorder %s13, 0
      %p47 = por %p45, %p46
      %p48 = scmp.ne.s32.totalorder %s37, %s40
      %p49 = scmp.eq.s32.totalorder %s18, 1
      %p50 = por %p48, %p49
      %p51 = scmp.ne.s32.totalorder %s40, %s41
      %p52 = scmp.eq.s32.totalorder %s18, 0
      %p53 = por %p51, %p52
      %p54 = scmp.ne.s32.totalorder %s40, %s41
      %p55 = scmp.eq.s32.totalorder %s19, 1
      %p56 = por %p54, %p55
      %p58 = scmp.ne.s32.totalorder %s41, %s57
      %p59 = scmp.eq.s32.totalorder %s19, 0
      %p60 = por %p58, %p59
      %s62 = sadd.s32 %s61, 1
      %p65 = scmp.eq.s32.totalorder %s13, 1
      %p66 = scmp.ne.s32.totalorder %s61, %s63
      %p67 = scmp.eq.s32.totalorder %s13, 0
      %p68 = por %p66, %p67
      %p69 = scmp.ne.s32.totalorder %s61, %s63
      %p70 = scmp.eq.s32.totalorder %s18, 1
      %p71 = por %p69, %p70
      %p72 = scmp.ne.s32.totalorder %s63, %s64
      %p73 = scmp.eq.s32.totalorder %s18, 0
      %p74 = por %p72, %p73
      %p75 = scmp.ne.s32.totalorder %s63, %s64
      %p76 = scmp.eq.s32.totalorder %s19, 1
      %p77 = por %p75, %p76
      %p79 = scmp.ne.s32.totalorder %s64, %s78
      %p80 = scmp.eq.s32.totalorder %s19, 0
      %p81 = por %p79, %p80
      %s83 = sadd.s32 %s82, 1
      %p86 = scmp.eq.s32.totalorder %s13, 1
      %p87 = scmp.ne.s32.totalorder %s82, %s84
      %p88 = scmp.eq.s32.totalorder %s13, 0
      %p89 = por %p87, %p88
      %p90 = scmp.ne.s32.totalorder %s82, %s84
      %p91 = scmp.eq.s32.totalorder %s18, 1
      %p92 = por %p90, %p91
      %p93 = scmp.ne.s32.totalorder %s84, %s85
      %p94 = scmp.eq.s32.totalorder %s18, 0
      %p95 = por %p93, %p94
      %p96 = scmp.ne.s32.totalorder %s84, %s85
      %p97 = scmp.eq.s32.totalorder %s19, 1
      %p98 = por %p96, %p97
      %p100 = scmp.ne.s32.totalorder %s85, %s99
      %p101 = scmp.eq.s32.totalorder %s19, 0
      %p102 = por %p100, %p101
      %s104 = sadd.s32 %s103, 1
      %p107 = scmp.eq.s32.totalorder %s13, 1
      %p108 = scmp.ne.s32.totalorder %s103, %s105
      %p109 = scmp.eq.s32.totalorder %s13, 0
      %p110 = por %p108, %p109
      %p111 = scmp.ne.s32.totalorder %s103, %s105
      %p112 = scmp.eq.s32.totalorder %s18, 1
      %p113 = por %p111, %p112
      %p114 = scmp.ne.s32.totalorder %s105, %s106
      %p115 = scmp.eq.s32.totalorder %s18, 0
      %p116 = por %p114, %p115
      %p117 = scmp.ne.s32.totalorder %s105, %s106
      %p118 = scmp.eq.s32.totalorder %s19, 1
      %p119 = por %p117, %p118
      %p121 = scmp.ne.s32.totalorder %s106, %s120
      %p122 = scmp.eq.s32.totalorder %s19, 0
      %p123 = por %p121, %p122
      %s124 = ssub.s32 %s20, %s32
      %s125 = ssub.s32 %s21, %s28
      %s126 = sor.u32 %s124, %s125
      %p127 = scmp.eq.s32.totalorder %s126, 0
      %s129 = sadd.s32 %s128, 1
      %s130 = scalar_select %p127, %s128, %s129
      %p133 = pneg %p127
      %p134 = scmp.eq.s32.totalorder %s13, 1
      %p135 = por %p133, %p134
      %p136 = scmp.ne.s32.totalorder %s128, %s131
      %p137 = scmp.eq.s32.totalorder %s13, 0
      %p138 = por %p136, %p137
      %p139 = scmp.ne.s32.totalorder %s128, %s131
      %p140 = scmp.eq.s32.totalorder %s18, 1
      %p141 = por %p139, %p140
      %p142 = scmp.ne.s32.totalorder %s131, %s132
      %p143 = scmp.eq.s32.totalorder %s18, 0
      %p144 = por %p142, %p143
      %p145 = scmp.ne.s32.totalorder %s131, %s132
      %p146 = scmp.eq.s32.totalorder %s19, 1
      %p147 = por %p145, %p146
      %p149 = scmp.ne.s32.totalorder %s132, %s148
      %p150 = scmp.eq.s32.totalorder %s19, 0
      %p151 = por %p149, %p150
      %p152 = scmp.le.s32.totalorder 1, %s13
      %p153 = scmp.lt.s32.totalorder %s13, 3
      %p154 = pnand %p152, %p153
      %p155 = pneg %p154
      // Predicated region
      $region9: #{downblock2d_forward.3} parent=5 // pred_check
        _
      $region10: #{downblock2d_forward.3} parent=5 // pred_check_branch
        %157 = sbr.rel (%p154) target = $region12
      $region11: #{downblock2d_forward.3} parent=5 // pred_region
        %s158 = ssub.s32 %s13, 1
        // Predicated region
        $region13: #{downblock2d_forward.3} parent=11 // pred_check
          %p159 = pneg %p74
        $region14: #{downblock2d_forward.3} parent=11 // pred_check_branch
          %161 = sbr.rel (%p159) target = $region16
        $region15: #{downblock2d_forward.3} parent=11 // pred_region
          _
        $region16: #{downblock2d_forward.3} parent=11 // pred_fallthru
          _
        // Predicated region
        $region17: #{downblock2d_forward.3} parent=11 // pred_check
          %p162 = pneg %p95
        $region18: #{downblock2d_forward.3} parent=11 // pred_check_branch
          %164 = sbr.rel (%p162) target = $region20
        $region19: #{downblock2d_forward.3} parent=11 // pred_region
          _
        $region20: #{downblock2d_forward.3} parent=11 // pred_fallthru
          _
        // Predicated region
        $region21: #{downblock2d_forward.3} parent=11 // pred_check
          %p165 = pneg %p116
        $region22: #{downblock2d_forward.3} parent=11 // pred_check_branch
          %167 = sbr.rel (%p165) target = $region24
        $region23: #{downblock2d_forward.3} parent=11 // pred_region
          _
        $region24: #{downblock2d_forward.3} parent=11 // pred_fallthru
          _
      $region12: #{downblock2d_forward.3} parent=5 // pred_fallthru
        _
      %p168 = scmp.lt.s32.totalorder %s13, 2
      // Predicated region
      $region25: #{downblock2d_forward.3} parent=5 // pred_check
        %p169 = pneg %p168
      $region26: #{downblock2d_forward.3} parent=5 // pred_check_branch
        %171 = sbr.rel (%p169) target = $region28
      $region27: #{downblock2d_forward.3} parent=5 // pred_region
        // Predicated region
        $region29: #{downblock2d_forward.3} parent=27 // pred_check
          %p172 = pneg %p47
        $region30: #{downblock2d_forward.3} parent=27 // pred_check_branch
          %174 = sbr.rel (%p172) target = $region32
        $region31: #{downblock2d_forward.3} parent=27 // pred_region
          %p175 = scmp.lt.s32.totalorder %s20, 1
          %s176 = scalar_select %p175, %s20, 1
          %p177 = scmp.lt.s32.totalorder %s21, 0
          %s178 = scalar_select %p177, %s21, 0
          %s179 = smul.addr %s178, 54
          %s180 = smul.addr %s176, 54
          %s181 = sadd.s32 %s179, %s180
          %s182 = smul.addr %s181, 4
          %s183 = scalar_lea.vmem %s0, %s182
        $region32: #{downblock2d_forward.3} parent=27 // pred_fallthru
          _
      $region28: #{downblock2d_forward.3} parent=5 // pred_fallthru
        _
      %p184 = scmp.le.s32.totalorder 1, %s13
      %p185 = scmp.lt.s32.totalorder %s13, 3
      %p186 = pnand %p184, %p185
      %p187 = pneg %p186
      // Predicated region
      $region33: #{downblock2d_forward.3} parent=5 // pred_check
        _
      $region34: #{downblock2d_forward.3} parent=5 // pred_check_branch
        %189 = sbr.rel (%p186) target = $region36
      $region35: #{downblock2d_forward.3} parent=5 // pred_region
        %s190 = ssub.s32 %s13, 1
        %p191 = scmp.lt.s32.totalorder %s22, 1
        %s192 = scalar_select %p191, %s22, 1
        %p193 = scmp.lt.s32.totalorder %s23, 0
        %s194 = scalar_select %p193, %s23, 0
        %s195 = smul.addr %s194, 54
        %s196 = smul.addr %s192, 54
        %s197 = sadd.s32 %s195, %s196
        %s198 = smul.addr %s197, 4
        %s199 = scalar_lea.vmem %s0, %s198
        %p200 = pneg %p53
        %p201 = pneg %p50
        %p202 = pneg %p74
        %p203 = pneg %p71
        %p204 = pneg %p95
        %p205 = pneg %p92
        %p206 = pneg %p116
        %p207 = pneg %p113
        %p208 = pneg %p144
        %p209 = pneg %p141
        %s210 = sand.u32 %s131, 1
        %s211 = scalar_lea.sflag [#allocation4], %s210
        %s212 = sand.u32 %s131, 1
        %s213 = smul.addr %s212, 64
        %s214 = scalar_lea.vmem [#allocation3], %s213
        %p215 = scmp.lt.s32.totalorder %s22, 1
        %s216 = scalar_select %p215, %s22, 1
        %p217 = scmp.lt.s32.totalorder %s23, 0
        %s218 = scalar_select %p217, %s23, 0
        %s219 = smul.addr %s218, 54
        %s220 = smul.addr %s216, 54
        %s221 = sadd.s32 %s219, %s220
        %s222 = smul.addr %s221, 4
        %s223 = scalar_lea.vmem %s0, %s222
        %s224 = smul.u32 8, %s23
        %v226 = vld [vmem:[%s223] sm:$0xf]
        %v227 = vld [vmem:[%s223 + $0x4] sm:$0xf]
        %v228 = vld [vmem:[%s223 + $0x8] sm:$0xf]
        %v229 = vld [vmem:[%s223 + $0xc] sm:$0xf]
        %v230 = vld [vmem:[%s223 + $0x10] sm:$0xf]
        %v231 = vld [vmem:[%s223 + $0x14] sm:$0xf]
        %v232 = vld [vmem:[%s223 + $0x18] sm:$0xf]
        %v233 = vld [vmem:[%s223 + $0x1c] sm:$0xf]
        %v234 = vld [vmem:[%s223 + $0x20] sm:$0xf]
        %v235 = vld [vmem:[%s223 + $0x24] sm:$0xf]
        %v236 = vld [vmem:[%s223 + $0x28] sm:$0xf]
        %v237 = vld [vmem:[%s223 + $0x2c] sm:$0xf]
        %v238 = vld [vmem:[%s223 + $0x30] sm:$0xf]
        %v239 = vld [vmem:[%s223 + $0x34] sm:$0xf]
        %v240 = vld [vmem:[%s223 + $0x38] sm:$0xf]
        %v241 = vld [vmem:[%s223 + $0x3c] sm:$0xf]
        %v242 = vld [vmem:[%s223 + $0x40] sm:$0xf]
        %v243 = vld [vmem:[%s223 + $0x44] sm:$0xf]
        %v244 = vld [vmem:[%s223 + $0x48] sm:$0xf]
        %v245 = vld [vmem:[%s223 + $0x4c] sm:$0xf]
        %v246 = vld [vmem:[%s223 + $0x50] sm:$0xf]
        %v247 = vld [vmem:[%s223 + $0x54] sm:$0xf]
        %v248 = vld [vmem:[%s223 + $0x58] sm:$0xf]
        %v249 = vld [vmem:[%s223 + $0x5c] sm:$0xf]
        %v250 = vld [vmem:[%s223 + $0x60] sm:$0xf]
        %v251 = vld [vmem:[%s223 + $0x64] sm:$0xf]
        %v252 = vld [vmem:[%s223 + $0x68] sm:$0xf]
        %v253 = vld [vmem:[%s223 + $0x6c] sm:$0xf]
        %v254 = vld [vmem:[%s223 + $0x70] sm:$0xf]
        %v255 = vld [vmem:[%s223 + $0x74] sm:$0xf]
        %v256 = vld [vmem:[%s223 + $0x78] sm:$0xf]
        %v257 = vld [vmem:[%s223 + $0x7c] sm:$0xf]
        %v258 = vld [vmem:[%s223 + $0x80] sm:$0xf]
        %v259 = vld [vmem:[%s223 + $0x84] sm:$0xf]
        %v260 = vld [vmem:[%s223 + $0x88] sm:$0xf]
        %v261 = vld [vmem:[%s223 + $0x8c] sm:$0xf]
        %v262 = vld [vmem:[%s223 + $0x90] sm:$0xf]
        %v263 = vld [vmem:[%s223 + $0x94] sm:$0xf]
        %v264 = vld [vmem:[%s223 + $0x98] sm:$0xf]
        %v265 = vld [vmem:[%s223 + $0x9c] sm:$0xf]
        %v266 = vld [vmem:[%s223 + $0xa0] sm:$0xf]
        %v267 = vld [vmem:[%s223 + $0xa4] sm:$0xf]
        %v268 = vld [vmem:[%s223 + $0xa8] sm:$0xf]
        %v269 = vld [vmem:[%s223 + $0xac] sm:$0xf]
        %v270 = vld [vmem:[%s223 + $0xb0] sm:$0xf]
        %v271 = vld [vmem:[%s223 + $0xb4] sm:$0xf]
        %v272 = vld [vmem:[%s223 + $0xb8] sm:$0xf]
        %v273 = vld [vmem:[%s223 + $0xbc] sm:$0xf]
        %v274 = vld [vmem:[%s223 + $0xc0] sm:$0xf]
        %v275 = vld [vmem:[%s223 + $0xc4] sm:$0xf]
        %v276 = vld [vmem:[%s223 + $0xc8] sm:$0xf]
        %v277 = vld [vmem:[%s223 + $0xcc] sm:$0xf]
        %v278 = vld [vmem:[%s223 + $0xd0] sm:$0xf]
        %v279 = vld [vmem:[%s223 + $0xd4] sm:$0xf]
        %v328 = vunpack.c.l.b16 %v226
        %v329 = vunpack.c.l.b16 %v227
        %v330 = vunpack.c.l.b16 %v228
        %v331 = vunpack.c.l.b16 %v229
        %v332 = vunpack.c.l.b16 %v230
        %v333 = vunpack.c.l.b16 %v231
        %v334 = vunpack.c.l.b16 %v232
        %v335 = vunpack.c.l.b16 %v233
        %v336 = vunpack.c.l.b16 %v234
        %v337 = vunpack.c.l.b16 %v235
        %v338 = vunpack.c.l.b16 %v236
        %v339 = vunpack.c.l.b16 %v237
        %v340 = vunpack.c.l.b16 %v238
        %v341 = vunpack.c.l.b16 %v239
        %v342 = vunpack.c.l.b16 %v240
        %v343 = vunpack.c.l.b16 %v241
        %v344 = vunpack.c.l.b16 %v242
        %v345 = vunpack.c.l.b16 %v243
        %v346 = vunpack.c.l.b16 %v244
        %v347 = vunpack.c.l.b16 %v245
        %v348 = vunpack.c.l.b16 %v246
        %v349 = vunpack.c.l.b16 %v247
        %v350 = vunpack.c.l.b16 %v248
        %v351 = vunpack.c.l.b16 %v249
        %v352 = vunpack.c.l.b16 %v250
        %v353 = vunpack.c.l.b16 %v251
        %v354 = vunpack.c.l.b16 %v252
        %v355 = vunpack.c.l.b16 %v253
        %v356 = vunpack.c.l.b16 %v254
        %v357 = vunpack.c.l.b16 %v255
        %v358 = vunpack.c.l.b16 %v256
        %v359 = vunpack.c.l.b16 %v257
        %v360 = vunpack.c.l.b16 %v258
        %v361 = vunpack.c.l.b16 %v259
        %v362 = vunpack.c.l.b16 %v260
        %v363 = vunpack.c.l.b16 %v261
        %v364 = vunpack.c.l.b16 %v262
        %v365 = vunpack.c.l.b16 %v263
        %v366 = vunpack.c.l.b16 %v264
        %v367 = vunpack.c.l.b16 %v265
        %v368 = vunpack.c.l.b16 %v266
        %v369 = vunpack.c.l.b16 %v267
        %v370 = vunpack.c.l.b16 %v268
        %v371 = vunpack.c.l.b16 %v269
        %v372 = vunpack.c.l.b16 %v270
        %v373 = vunpack.c.l.b16 %v271
        %v374 = vunpack.c.l.b16 %v272
        %v375 = vunpack.c.l.b16 %v273
        %v376 = vpack.c.b16 %v329, %v328
        %v377 = vpack.c.b16 %v331, %v330
        %v378 = vpack.c.b16 %v333, %v332
        %v379 = vpack.c.b16 %v335, %v334
        %v380 = vpack.c.b16 %v337, %v336
        %v381 = vpack.c.b16 %v339, %v338
        %v382 = vpack.c.b16 %v341, %v340
        %v383 = vpack.c.b16 %v343, %v342
        %v384 = vpack.c.b16 %v345, %v344
        %v385 = vpack.c.b16 %v347, %v346
        %v386 = vpack.c.b16 %v349, %v348
        %v387 = vpack.c.b16 %v351, %v350
        %v388 = vpack.c.b16 %v353, %v352
        %v389 = vpack.c.b16 %v355, %v354
        %v390 = vpack.c.b16 %v357, %v356
        %v391 = vpack.c.b16 %v359, %v358
        %v392 = vpack.c.b16 %v361, %v360
        %v393 = vpack.c.b16 %v363, %v362
        %v394 = vpack.c.b16 %v365, %v364
        %v395 = vpack.c.b16 %v367, %v366
        %v396 = vpack.c.b16 %v369, %v368
        %v397 = vpack.c.b16 %v371, %v370
        %v398 = vpack.c.b16 %v373, %v372
        %v399 = vpack.c.b16 %v375, %v374
        %v403 = vunpack.c.l.b16 %v274
        %v404 = vunpack.c.l.b16 %v275
        %v405 = vunpack.c.l.b16 %v276
        %v406 = vpack.c.b16 %v332, %v331
        %v407 = vpack.c.b16 %v334, %v333
        %v408 = vpack.c.b16 %v336, %v335
        %v409 = vpack.c.b16 %v338, %v337
        %v410 = vpack.c.b16 %v340, %v339
        %v411 = vpack.c.b16 %v342, %v341
        %v412 = vpack.c.b16 %v344, %v343
        %v413 = vpack.c.b16 %v346, %v345
        %v414 = vpack.c.b16 %v348, %v347
        %v415 = vpack.c.b16 %v350, %v349
        %v416 = vpack.c.b16 %v352, %v351
        %v417 = vpack.c.b16 %v354, %v353
        %v418 = vpack.c.b16 %v356, %v355
        %v419 = vpack.c.b16 %v358, %v357
        %v420 = vpack.c.b16 %v360, %v359
        %v421 = vpack.c.b16 %v362, %v361
        %v422 = vpack.c.b16 %v364, %v363
        %v423 = vpack.c.b16 %v366, %v365
        %v424 = vpack.c.b16 %v368, %v367
        %v425 = vpack.c.b16 %v370, %v369
        %v426 = vpack.c.b16 %v372, %v371
        %v427 = vpack.c.b16 %v374, %v373
        %v428 = vpack.c.b16 %v403, %v375
        %v429 = vpack.c.b16 %v405, %v404
        %430 = vrot.lane.b32.xlu0 %v406, 32
        %v431 = vpop.permute.xlu0 %430
        %432 = vrot.lane.b32.xlu0 %v407, 32
        %v433 = vpop.permute.xlu0 %432
        %434 = vrot.lane.b32.xlu0 %v408, 32
        %v435 = vpop.permute.xlu0 %434
        %436 = vrot.lane.b32.xlu0 %v409, 32
        %v437 = vpop.permute.xlu0 %436
        %438 = vrot.lane.b32.xlu0 %v410, 32
        %v439 = vpop.permute.xlu0 %438
        %440 = vrot.lane.b32.xlu0 %v411, 32
        %v441 = vpop.permute.xlu0 %440
        %442 = vrot.lane.b32.xlu0 %v412, 32
        %v443 = vpop.permute.xlu0 %442
        %444 = vrot.lane.b32.xlu0 %v413, 32
        %v445 = vpop.permute.xlu0 %444
        %446 = vrot.lane.b32.xlu0 %v414, 32
        %v447 = vpop.permute.xlu0 %446
        %448 = vrot.lane.b32.xlu0 %v415, 32
        %v449 = vpop.permute.xlu0 %448
        %450 = vrot.lane.b32.xlu0 %v416, 32
        %v451 = vpop.permute.xlu0 %450
        %452 = vrot.lane.b32.xlu0 %v417, 32
        %v453 = vpop.permute.xlu0 %452
        %454 = vrot.lane.b32.xlu0 %v418, 32
        %v455 = vpop.permute.xlu0 %454
        %456 = vrot.lane.b32.xlu0 %v419, 32
        %v457 = vpop.permute.xlu0 %456
        %458 = vrot.lane.b32.xlu0 %v420, 32
        %v459 = vpop.permute.xlu0 %458
        %460 = vrot.lane.b32.xlu0 %v421, 32
        %v461 = vpop.permute.xlu0 %460
        %462 = vrot.lane.b32.xlu0 %v422, 32
        %v463 = vpop.permute.xlu0 %462
        %464 = vrot.lane.b32.xlu0 %v423, 32
        %v465 = vpop.permute.xlu0 %464
        %466 = vrot.lane.b32.xlu0 %v424, 32
        %v467 = vpop.permute.xlu0 %466
        %468 = vrot.lane.b32.xlu0 %v425, 32
        %v469 = vpop.permute.xlu0 %468
        %470 = vrot.lane.b32.xlu0 %v426, 32
        %v471 = vpop.permute.xlu0 %470
        %472 = vrot.lane.b32.xlu0 %v427, 32
        %v473 = vpop.permute.xlu0 %472
        %474 = vrot.lane.b32.xlu0 %v428, 32
        %v475 = vpop.permute.xlu0 %474
        %476 = vrot.lane.b32.xlu0 %v429, 32
        %v477 = vpop.permute.xlu0 %476
        %v481 = vunpack.c.l.b16 %v277
        %v482 = vunpack.c.l.b16 %v278
        %v483 = vunpack.c.l.b16 %v279
        %v484 = vpack.c.b16 %v404, %v403
        %v485 = vpack.c.b16 %v481, %v405
        %v486 = vpack.c.b16 %v483, %v482
        %487 = vrot.lane.b32.xlu0 %v379, 64
        %v488 = vpop.permute.xlu0 %487
        %489 = vrot.lane.b32.xlu0 %v380, 64
        %v490 = vpop.permute.xlu0 %489
        %491 = vrot.lane.b32.xlu0 %v381, 64
        %v492 = vpop.permute.xlu0 %491
        %493 = vrot.lane.b32.xlu0 %v382, 64
        %v494 = vpop.permute.xlu0 %493
        %495 = vrot.lane.b32.xlu0 %v383, 64
        %v496 = vpop.permute.xlu0 %495
        %497 = vrot.lane.b32.xlu0 %v384, 64
        %v498 = vpop.permute.xlu0 %497
        %499 = vrot.lane.b32.xlu0 %v385, 64
        %v500 = vpop.permute.xlu0 %499
        %501 = vrot.lane.b32.xlu0 %v386, 64
        %v502 = vpop.permute.xlu0 %501
        %503 = vrot.lane.b32.xlu0 %v387, 64
        %v504 = vpop.permute.xlu0 %503
        %505 = vrot.lane.b32.xlu0 %v388, 64
        %v506 = vpop.permute.xlu0 %505
        %507 = vrot.lane.b32.xlu0 %v389, 64
        %v508 = vpop.permute.xlu0 %507
        %509 = vrot.lane.b32.xlu0 %v390, 64
        %v510 = vpop.permute.xlu0 %509
        %511 = vrot.lane.b32.xlu0 %v391, 64
        %v512 = vpop.permute.xlu0 %511
        %513 = vrot.lane.b32.xlu0 %v392, 64
        %v514 = vpop.permute.xlu0 %513
        %515 = vrot.lane.b32.xlu0 %v393, 64
        %v516 = vpop.permute.xlu0 %515
        %517 = vrot.lane.b32.xlu0 %v394, 64
        %v518 = vpop.permute.xlu0 %517
        %519 = vrot.lane.b32.xlu0 %v395, 64
        %v520 = vpop.permute.xlu0 %519
        %521 = vrot.lane.b32.xlu0 %v396, 64
        %v522 = vpop.permute.xlu0 %521
        %523 = vrot.lane.b32.xlu0 %v397, 64
        %v524 = vpop.permute.xlu0 %523
        %525 = vrot.lane.b32.xlu0 %v398, 64
        %v526 = vpop.permute.xlu0 %525
        %527 = vrot.lane.b32.xlu0 %v399, 64
        %v528 = vpop.permute.xlu0 %527
        %529 = vrot.lane.b32.xlu0 %v484, 64
        %v530 = vpop.permute.xlu0 %529
        %531 = vrot.lane.b32.xlu0 %v485, 64
        %v532 = vpop.permute.xlu0 %531
        %533 = vrot.lane.b32.xlu0 %v486, 64
        %v534 = vpop.permute.xlu0 %533
        %vm535 = vcmask 261120
        %v538 = vsel %vm535, %v376, %v431
        %v541 = vsel %vm535, %v377, %v433
        %v544 = vsel %vm535, %v378, %v435
        %v547 = vsel %vm535, %v379, %v437
        %v550 = vsel %vm535, %v380, %v439
        %v553 = vsel %vm535, %v381, %v441
        %v556 = vsel %vm535, %v382, %v443
        %v559 = vsel %vm535, %v383, %v445
        %v562 = vsel %vm535, %v384, %v447
        %v565 = vsel %vm535, %v385, %v449
        %v568 = vsel %vm535, %v386, %v451
        %v571 = vsel %vm535, %v387, %v453
        %v574 = vsel %vm535, %v388, %v455
        %v577 = vsel %vm535, %v389, %v457
        %v580 = vsel %vm535, %v390, %v459
        %v583 = vsel %vm535, %v391, %v461
        %v586 = vsel %vm535, %v392, %v463
        %v589 = vsel %vm535, %v393, %v465
        %v592 = vsel %vm535, %v394, %v467
        %v595 = vsel %vm535, %v395, %v469
        %v598 = vsel %vm535, %v396, %v471
        %v601 = vsel %vm535, %v397, %v473
        %v604 = vsel %vm535, %v398, %v475
        %v607 = vsel %vm535, %v399, %v477
        %vm608 = vcmask 523264
        %v610 = vsel %vm608, %v538, %v488
        %v612 = vsel %vm608, %v541, %v490
        %v614 = vsel %vm608, %v544, %v492
        %v616 = vsel %vm608, %v547, %v494
        %v618 = vsel %vm608, %v550, %v496
        %v620 = vsel %vm608, %v553, %v498
        %v622 = vsel %vm608, %v556, %v500
        %v624 = vsel %vm608, %v559, %v502
        %v626 = vsel %vm608, %v562, %v504
        %v628 = vsel %vm608, %v565, %v506
        %v630 = vsel %vm608, %v568, %v508
        %v632 = vsel %vm608, %v571, %v510
        %v634 = vsel %vm608, %v574, %v512
        %v636 = vsel %vm608, %v577, %v514
        %v638 = vsel %vm608, %v580, %v516
        %v640 = vsel %vm608, %v583, %v518
        %v642 = vsel %vm608, %v586, %v520
        %v644 = vsel %vm608, %v589, %v522
        %v646 = vsel %vm608, %v592, %v524
        %v648 = vsel %vm608, %v595, %v526
        %v650 = vsel %vm608, %v598, %v528
        %v652 = vsel %vm608, %v601, %v530
        %v654 = vsel %vm608, %v604, %v532
        %v656 = vsel %vm608, %v607, %v534
        %v657 = vld [vmem:[%s1] sm:$0xff]
        %v658 = vld [vmem:[%s1 + $0x8] sm:$0xff]
        %v659 = vld [vmem:[%s1 + $0x10] sm:$0xff]
        %v660 = vld [vmem:[%s1 + $0x18] sm:$0xff]
        %v661 = vld [vmem:[%s1 + $0x20] sm:$0xff]
        %v662 = vld [vmem:[%s1 + $0x28] sm:$0xff]
        %v663 = vld [vmem:[%s1 + $0x30] sm:$0xff]
        %v664 = vld [vmem:[%s1 + $0x38] sm:$0xff]
        %v665 = vld [vmem:[%s1 + $0x40] sm:$0xff]
        %v666 = vld [vmem:[%s1 + $0x48] sm:$0xff]
        %v667 = vld [vmem:[%s1 + $0x50] sm:$0xff]
        %v668 = vld [vmem:[%s1 + $0x58] sm:$0xff]
        %v681 = vunpack.c.l.b16 %v657
        %v682 = vunpack.c.h.b16 %v657
        %v683 = vunpack.c.l.b16 %v658
        %v684 = vunpack.c.h.b16 %v658
        %v685 = vunpack.c.l.b16 %v659
        %v686 = vunpack.c.h.b16 %v659
        %v687 = vunpack.c.l.b16 %v660
        %v688 = vunpack.c.h.b16 %v660
        %v689 = vunpack.c.l.b16 %v661
        %v690 = vunpack.c.h.b16 %v661
        %v691 = vunpack.c.l.b16 %v662
        %v692 = vunpack.c.h.b16 %v662
        %v693 = vunpack.c.l.b16 %v663
        %v694 = vunpack.c.h.b16 %v663
        %v695 = vunpack.c.l.b16 %v664
        %v696 = vunpack.c.h.b16 %v664
        %v697 = vunpack.c.l.b16 %v665
        %v698 = vunpack.c.h.b16 %v665
        %v699 = vunpack.c.l.b16 %v666
        %v700 = vunpack.c.h.b16 %v666
        %v701 = vunpack.c.l.b16 %v667
        %v702 = vunpack.c.h.b16 %v667
        %v703 = vunpack.c.l.b16 %v668
        %v704 = vunpack.c.h.b16 %v668
        %v705 = vpack.c.b16 %v683, %v681
        %v706 = vpack.c.b16 %v684, %v682
        %v707 = vpack.c.b16 %v687, %v685
        %v708 = vpack.c.b16 %v688, %v686
        %v709 = vpack.c.b16 %v691, %v689
        %v710 = vpack.c.b16 %v692, %v690
        %v711 = vpack.c.b16 %v695, %v693
        %v712 = vpack.c.b16 %v696, %v694
        %v713 = vpack.c.b16 %v699, %v697
        %v714 = vpack.c.b16 %v700, %v698
        %v715 = vpack.c.b16 %v703, %v701
        %v716 = vpack.c.b16 %v704, %v702
        %vm729 = vcmask 785408
        %v730 = vsel %vm729, %v610, 0
        %v732 = vsel %vm729, %v612, 0
        %v734 = vsel %vm729, %v614, 0
        %v736 = vsel %vm729, %v616, 0
        %v738 = vsel %vm729, %v618, 0
        %v740 = vsel %vm729, %v620, 0
        %v742 = vsel %vm729, %v622, 0
        %v744 = vsel %vm729, %v624, 0
        %v746 = vsel %vm729, %v626, 0
        %v748 = vsel %vm729, %v628, 0
        %v750 = vsel %vm729, %v630, 0
        %v752 = vsel %vm729, %v632, 0
        %v754 = vsel %vm729, %v634, 0
        %v756 = vsel %vm729, %v636, 0
        %v758 = vsel %vm729, %v638, 0
        %v760 = vsel %vm729, %v640, 0
        %v762 = vsel %vm729, %v642, 0
        %v764 = vsel %vm729, %v644, 0
        %v766 = vsel %vm729, %v646, 0
        %v768 = vsel %vm729, %v648, 0
        %v770 = vsel %vm729, %v650, 0
        %v772 = vsel %vm729, %v652, 0
        %v774 = vsel %vm729, %v654, 0
        %v776 = vsel %vm729, %v656, 0
        %778 = vmatpush.bf16.msra.mxu0 0
        %779 = vmatpush.bf16.msra.mxu0 0
        %780 = vmatpush.bf16.msra.mxu0 %v715
        %781 = vmatpush.bf16.msra.mxu0 %v713
        %782 = vmatpush.bf16.msra.mxu0 %v711
        %783 = vmatpush.bf16.msra.mxu0 %v709
        %784 = vmatpush.bf16.msra.mxu0 %v707
        %785 = vmatpush.bf16.msra.mxu0 %v705
        %786 = vmatmul.bf16.gmra.mxu0 %v730
        %v787 = vpop.f32.mrf.mxu0
        %v788 = vadd.f32 0.0, %v787
        %v789 = vpop.f32.mrf.mxu0
        %v790 = vadd.f32 0.0, %v789
        %791 = vmatmul.bf16.gmra.mxu0 %v732
        %v792 = vpop.f32.mrf.mxu0
        %v793 = vadd.f32 0.0, %v792
        %v794 = vpop.f32.mrf.mxu0
        %v795 = vadd.f32 0.0, %v794
        %796 = vmatmul.bf16.gmra.mxu0 %v734
        %v797 = vpop.f32.mrf.mxu0
        %v798 = vadd.f32 0.0, %v797
        %v799 = vpop.f32.mrf.mxu0
        %v800 = vadd.f32 0.0, %v799
        %801 = vmatmul.bf16.gmra.mxu0 %v736
        %v802 = vpop.f32.mrf.mxu0
        %v803 = vadd.f32 0.0, %v802
        %v804 = vpop.f32.mrf.mxu0
        %v805 = vadd.f32 0.0, %v804
        %806 = vmatmul.bf16.gmra.mxu0 %v738
        %v807 = vpop.f32.mrf.mxu0
        %v808 = vadd.f32 0.0, %v807
        %v809 = vpop.f32.mrf.mxu0
        %v810 = vadd.f32 0.0, %v809
        %811 = vmatmul.bf16.gmra.mxu0 %v740
        %v812 = vpop.f32.mrf.mxu0
        %v813 = vadd.f32 0.0, %v812
        %v814 = vpop.f32.mrf.mxu0
        %v815 = vadd.f32 0.0, %v814
        %816 = vmatmul.bf16.gmra.mxu0 %v742
        %v817 = vpop.f32.mrf.mxu0
        %v818 = vadd.f32 0.0, %v817
        %v819 = vpop.f32.mrf.mxu0
        %v820 = vadd.f32 0.0, %v819
        %821 = vmatmul.bf16.gmra.mxu0 %v744
        %v822 = vpop.f32.mrf.mxu0
        %v823 = vadd.f32 0.0, %v822
        %v824 = vpop.f32.mrf.mxu0
        %v825 = vadd.f32 0.0, %v824
        %826 = vmatmul.bf16.gmra.mxu0 %v746
        %v827 = vpop.f32.mrf.mxu0
        %v828 = vadd.f32 0.0, %v827
        %v829 = vpop.f32.mrf.mxu0
        %v830 = vadd.f32 0.0, %v829
        %831 = vmatmul.bf16.gmra.mxu0 %v748
        %v832 = vpop.f32.mrf.mxu0
        %v833 = vadd.f32 0.0, %v832
        %v834 = vpop.f32.mrf.mxu0
        %v835 = vadd.f32 0.0, %v834
        %836 = vmatmul.bf16.gmra.mxu0 %v750
        %v837 = vpop.f32.mrf.mxu0
        %v838 = vadd.f32 0.0, %v837
        %v839 = vpop.f32.mrf.mxu0
        %v840 = vadd.f32 0.0, %v839
        %841 = vmatmul.bf16.gmra.mxu0 %v752
        %v842 = vpop.f32.mrf.mxu0
        %v843 = vadd.f32 0.0, %v842
        %v844 = vpop.f32.mrf.mxu0
        %v845 = vadd.f32 0.0, %v844
        %846 = vmatmul.bf16.gmra.mxu0 %v754
        %v847 = vpop.f32.mrf.mxu0
        %v848 = vadd.f32 0.0, %v847
        %v849 = vpop.f32.mrf.mxu0
        %v850 = vadd.f32 0.0, %v849
        %851 = vmatmul.bf16.gmra.mxu0 %v756
        %v852 = vpop.f32.mrf.mxu0
        %v853 = vadd.f32 0.0, %v852
        %v854 = vpop.f32.mrf.mxu0
        %v855 = vadd.f32 0.0, %v854
        %856 = vmatmul.bf16.gmra.mxu0 %v758
        %v857 = vpop.f32.mrf.mxu0
        %v858 = vadd.f32 0.0, %v857
        %v859 = vpop.f32.mrf.mxu0
        %v860 = vadd.f32 0.0, %v859
        %861 = vmatmul.bf16.gmra.mxu0 %v760
        %v862 = vpop.f32.mrf.mxu0
        %v863 = vadd.f32 0.0, %v862
        %v864 = vpop.f32.mrf.mxu0
        %v865 = vadd.f32 0.0, %v864
        %866 = vmatmul.bf16.gmra.mxu0 %v762
        %v867 = vpop.f32.mrf.mxu0
        %v868 = vadd.f32 0.0, %v867
        %v869 = vpop.f32.mrf.mxu0
        %v870 = vadd.f32 0.0, %v869
        %871 = vmatmul.bf16.gmra.mxu0 %v764
        %v872 = vpop.f32.mrf.mxu0
        %v873 = vadd.f32 0.0, %v872
        %v874 = vpop.f32.mrf.mxu0
        %v875 = vadd.f32 0.0, %v874
        %876 = vmatmul.bf16.gmra.mxu0 %v766
        %v877 = vpop.f32.mrf.mxu0
        %v878 = vadd.f32 0.0, %v877
        %v879 = vpop.f32.mrf.mxu0
        %v880 = vadd.f32 0.0, %v879
        %881 = vmatmul.bf16.gmra.mxu0 %v768
        %v882 = vpop.f32.mrf.mxu0
        %v883 = vadd.f32 0.0, %v882
        %v884 = vpop.f32.mrf.mxu0
        %v885 = vadd.f32 0.0, %v884
        %886 = vmatmul.bf16.gmra.mxu0 %v770
        %v887 = vpop.f32.mrf.mxu0
        %v888 = vadd.f32 0.0, %v887
        %v889 = vpop.f32.mrf.mxu0
        %v890 = vadd.f32 0.0, %v889
        %891 = vmatmul.bf16.gmra.mxu0 %v772
        %v892 = vpop.f32.mrf.mxu0
        %v893 = vadd.f32 0.0, %v892
        %v894 = vpop.f32.mrf.mxu0
        %v895 = vadd.f32 0.0, %v894
        %896 = vmatmul.bf16.gmra.mxu0 %v774
        %v897 = vpop.f32.mrf.mxu0
        %v898 = vadd.f32 0.0, %v897
        %v899 = vpop.f32.mrf.mxu0
        %v900 = vadd.f32 0.0, %v899
        %901 = vmatmul.bf16.gmra.mxu0 %v776
        %v902 = vpop.f32.mrf.mxu0
        %v903 = vadd.f32 0.0, %v902
        %v904 = vpop.f32.mrf.mxu0
        %v905 = vadd.f32 0.0, %v904
        %906 = vdwg.mxu0
        %907 = vmatpush.bf16.msra.mxu0 0
        %908 = vmatpush.bf16.msra.mxu0 0
        %909 = vmatpush.bf16.msra.mxu0 %v716
        %910 = vmatpush.bf16.msra.mxu0 %v714
        %911 = vmatpush.bf16.msra.mxu0 %v712
        %912 = vmatpush.bf16.msra.mxu0 %v710
        %913 = vmatpush.bf16.msra.mxu0 %v708
        %914 = vmatpush.bf16.msra.mxu0 %v706
        %915 = vmatmul.bf16.gmra.mxu0 %v730
        %v916 = vpop.f32.mrf.mxu0
        %v917 = vadd.f32 0.0, %v916
        %v918 = vpop.f32.mrf.mxu0
        %v919 = vadd.f32 0.0, %v918
        %920 = vmatmul.bf16.gmra.mxu0 %v732
        %v921 = vpop.f32.mrf.mxu0
        %v922 = vadd.f32 0.0, %v921
        %v923 = vpop.f32.mrf.mxu0
        %v924 = vadd.f32 0.0, %v923
        %925 = vmatmul.bf16.gmra.mxu0 %v734
        %v926 = vpop.f32.mrf.mxu0
        %v927 = vadd.f32 0.0, %v926
        %v928 = vpop.f32.mrf.mxu0
        %v929 = vadd.f32 0.0, %v928
        %930 = vmatmul.bf16.gmra.mxu0 %v736
        %v931 = vpop.f32.mrf.mxu0
        %v932 = vadd.f32 0.0, %v931
        %v933 = vpop.f32.mrf.mxu0
        %v934 = vadd.f32 0.0, %v933
        %935 = vmatmul.bf16.gmra.mxu0 %v738
        %v936 = vpop.f32.mrf.mxu0
        %v937 = vadd.f32 0.0, %v936
        %v938 = vpop.f32.mrf.mxu0
        %v939 = vadd.f32 0.0, %v938
        %940 = vmatmul.bf16.gmra.mxu0 %v740
        %v941 = vpop.f32.mrf.mxu0
        %v942 = vadd.f32 0.0, %v941
        %v943 = vpop.f32.mrf.mxu0
        %v944 = vadd.f32 0.0, %v943
        %945 = vmatmul.bf16.gmra.mxu0 %v742
        %v946 = vpop.f32.mrf.mxu0
        %v947 = vadd.f32 0.0, %v946
        %v948 = vpop.f32.mrf.mxu0
        %v949 = vadd.f32 0.0, %v948
        %950 = vmatmul.bf16.gmra.mxu0 %v744
        %v951 = vpop.f32.mrf.mxu0
        %v952 = vadd.f32 0.0, %v951
        %v953 = vpop.f32.mrf.mxu0
        %v954 = vadd.f32 0.0, %v953
        %955 = vmatmul.bf16.gmra.mxu0 %v746
        %v956 = vpop.f32.mrf.mxu0
        %v957 = vadd.f32 0.0, %v956
        %v958 = vpop.f32.mrf.mxu0
        %v959 = vadd.f32 0.0, %v958
        %960 = vmatmul.bf16.gmra.mxu0 %v748
        %v961 = vpop.f32.mrf.mxu0
        %v962 = vadd.f32 0.0, %v961
        %v963 = vpop.f32.mrf.mxu0
        %v964 = vadd.f32 0.0, %v963
        %965 = vmatmul.bf16.gmra.mxu0 %v750
        %v966 = vpop.f32.mrf.mxu0
        %v967 = vadd.f32 0.0, %v966
        %v968 = vpop.f32.mrf.mxu0
        %v969 = vadd.f32 0.0, %v968
        %970 = vmatmul.bf16.gmra.mxu0 %v752
        %v971 = vpop.f32.mrf.mxu0
        %v972 = vadd.f32 0.0, %v971
        %v973 = vpop.f32.mrf.mxu0
        %v974 = vadd.f32 0.0, %v973
        %975 = vmatmul.bf16.gmra.mxu0 %v754
        %v976 = vpop.f32.mrf.mxu0
        %v977 = vadd.f32 0.0, %v976
        %v978 = vpop.f32.mrf.mxu0
        %v979 = vadd.f32 0.0, %v978
        %980 = vmatmul.bf16.gmra.mxu0 %v756
        %v981 = vpop.f32.mrf.mxu0
        %v982 = vadd.f32 0.0, %v981
        %v983 = vpop.f32.mrf.mxu0
        %v984 = vadd.f32 0.0, %v983
        %985 = vmatmul.bf16.gmra.mxu0 %v758
        %v986 = vpop.f32.mrf.mxu0
        %v987 = vadd.f32 0.0, %v986
        %v988 = vpop.f32.mrf.mxu0
        %v989 = vadd.f32 0.0, %v988
        %990 = vmatmul.bf16.gmra.mxu0 %v760
        %v991 = vpop.f32.mrf.mxu0
        %v992 = vadd.f32 0.0, %v991
        %v993 = vpop.f32.mrf.mxu0
        %v994 = vadd.f32 0.0, %v993
        %995 = vmatmul.bf16.gmra.mxu0 %v762
        %v996 = vpop.f32.mrf.mxu0
        %v997 = vadd.f32 0.0, %v996
        %v998 = vpop.f32.mrf.mxu0
        %v999 = vadd.f32 0.0, %v998
        %1000 = vmatmul.bf16.gmra.mxu0 %v764
        %v1001 = vpop.f32.mrf.mxu0
        %v1002 = vadd.f32 0.0, %v1001
        %v1003 = vpop.f32.mrf.mxu0
        %v1004 = vadd.f32 0.0, %v1003
        %1005 = vmatmul.bf16.gmra.mxu0 %v766
        %v1006 = vpop.f32.mrf.mxu0
        %v1007 = vadd.f32 0.0, %v1006
        %v1008 = vpop.f32.mrf.mxu0
        %v1009 = vadd.f32 0.0, %v1008
        %1010 = vmatmul.bf16.gmra.mxu0 %v768
        %v1011 = vpop.f32.mrf.mxu0
        %v1012 = vadd.f32 0.0, %v1011
        %v1013 = vpop.f32.mrf.mxu0
        %v1014 = vadd.f32 0.0, %v1013
        %1015 = vmatmul.bf16.gmra.mxu0 %v770
        %v1016 = vpop.f32.mrf.mxu0
        %v1017 = vadd.f32 0.0, %v1016
        %v1018 = vpop.f32.mrf.mxu0
        %v1019 = vadd.f32 0.0, %v1018
        %1020 = vmatmul.bf16.gmra.mxu0 %v772
        %v1021 = vpop.f32.mrf.mxu0
        %v1022 = vadd.f32 0.0, %v1021
        %v1023 = vpop.f32.mrf.mxu0
        %v1024 = vadd.f32 0.0, %v1023
        %1025 = vmatmul.bf16.gmra.mxu0 %v774
        %v1026 = vpop.f32.mrf.mxu0
        %v1027 = vadd.f32 0.0, %v1026
        %v1028 = vpop.f32.mrf.mxu0
        %v1029 = vadd.f32 0.0, %v1028
        %1030 = vmatmul.bf16.gmra.mxu0 %v776
        %v1031 = vpop.f32.mrf.mxu0
        %v1032 = vadd.f32 0.0, %v1031
        %v1033 = vpop.f32.mrf.mxu0
        %v1034 = vadd.f32 0.0, %v1033
        %1035 = vdwg.mxu0
        %1084 = vrot.lane.b32.xlu0 %v788, 64
        %v1085 = vpop.permute.xlu0 %1084
        %1086 = vrot.lane.b32.xlu0 %v790, 64
        %v1087 = vpop.permute.xlu0 %1086
        %1088 = vrot.lane.b32.xlu0 %v793, 64
        %v1089 = vpop.permute.xlu0 %1088
        %1090 = vrot.lane.b32.xlu0 %v795, 64
        %v1091 = vpop.permute.xlu0 %1090
        %1092 = vrot.lane.b32.xlu0 %v798, 64
        %v1093 = vpop.permute.xlu0 %1092
        %1094 = vrot.lane.b32.xlu0 %v800, 64
        %v1095 = vpop.permute.xlu0 %1094
        %1096 = vrot.lane.b32.xlu0 %v803, 64
        %v1097 = vpop.permute.xlu0 %1096
        %1098 = vrot.lane.b32.xlu0 %v805, 64
        %v1099 = vpop.permute.xlu0 %1098
        %1100 = vrot.lane.b32.xlu0 %v808, 64
        %v1101 = vpop.permute.xlu0 %1100
        %1102 = vrot.lane.b32.xlu0 %v810, 64
        %v1103 = vpop.permute.xlu0 %1102
        %1104 = vrot.lane.b32.xlu0 %v813, 64
        %v1105 = vpop.permute.xlu0 %1104
        %1106 = vrot.lane.b32.xlu0 %v815, 64
        %v1107 = vpop.permute.xlu0 %1106
        %1108 = vrot.lane.b32.xlu0 %v818, 64
        %v1109 = vpop.permute.xlu0 %1108
        %1110 = vrot.lane.b32.xlu0 %v820, 64
        %v1111 = vpop.permute.xlu0 %1110
        %1112 = vrot.lane.b32.xlu0 %v823, 64
        %v1113 = vpop.permute.xlu0 %1112
        %1114 = vrot.lane.b32.xlu0 %v825, 64
        %v1115 = vpop.permute.xlu0 %1114
        %1116 = vrot.lane.b32.xlu0 %v828, 64
        %v1117 = vpop.permute.xlu0 %1116
        %1118 = vrot.lane.b32.xlu0 %v830, 64
        %v1119 = vpop.permute.xlu0 %1118
        %1120 = vrot.lane.b32.xlu0 %v833, 64
        %v1121 = vpop.permute.xlu0 %1120
        %1122 = vrot.lane.b32.xlu0 %v835, 64
        %v1123 = vpop.permute.xlu0 %1122
        %1124 = vrot.lane.b32.xlu0 %v838, 64
        %v1125 = vpop.permute.xlu0 %1124
        %1126 = vrot.lane.b32.xlu0 %v840, 64
        %v1127 = vpop.permute.xlu0 %1126
        %1128 = vrot.lane.b32.xlu0 %v843, 64
        %v1129 = vpop.permute.xlu0 %1128
        %1130 = vrot.lane.b32.xlu0 %v845, 64
        %v1131 = vpop.permute.xlu0 %1130
        %1132 = vrot.lane.b32.xlu0 %v848, 64
        %v1133 = vpop.permute.xlu0 %1132
        %1134 = vrot.lane.b32.xlu0 %v850, 64
        %v1135 = vpop.permute.xlu0 %1134
        %1136 = vrot.lane.b32.xlu0 %v853, 64
        %v1137 = vpop.permute.xlu0 %1136
        %1138 = vrot.lane.b32.xlu0 %v855, 64
        %v1139 = vpop.permute.xlu0 %1138
        %1140 = vrot.lane.b32.xlu0 %v858, 64
        %v1141 = vpop.permute.xlu0 %1140
        %1142 = vrot.lane.b32.xlu0 %v860, 64
        %v1143 = vpop.permute.xlu0 %1142
        %1144 = vrot.lane.b32.xlu0 %v863, 64
        %v1145 = vpop.permute.xlu0 %1144
        %1146 = vrot.lane.b32.xlu0 %v865, 64
        %v1147 = vpop.permute.xlu0 %1146
        %1148 = vrot.lane.b32.xlu0 %v868, 64
        %v1149 = vpop.permute.xlu0 %1148
        %1150 = vrot.lane.b32.xlu0 %v870, 64
        %v1151 = vpop.permute.xlu0 %1150
        %1152 = vrot.lane.b32.xlu0 %v873, 64
        %v1153 = vpop.permute.xlu0 %1152
        %1154 = vrot.lane.b32.xlu0 %v875, 64
        %v1155 = vpop.permute.xlu0 %1154
        %1156 = vrot.lane.b32.xlu0 %v878, 64
        %v1157 = vpop.permute.xlu0 %1156
        %1158 = vrot.lane.b32.xlu0 %v880, 64
        %v1159 = vpop.permute.xlu0 %1158
        %1160 = vrot.lane.b32.xlu0 %v883, 64
        %v1161 = vpop.permute.xlu0 %1160
        %1162 = vrot.lane.b32.xlu0 %v885, 64
        %v1163 = vpop.permute.xlu0 %1162
        %1164 = vrot.lane.b32.xlu0 %v888, 64
        %v1165 = vpop.permute.xlu0 %1164
        %1166 = vrot.lane.b32.xlu0 %v890, 64
        %v1167 = vpop.permute.xlu0 %1166
        %1168 = vrot.lane.b32.xlu0 %v893, 64
        %v1169 = vpop.permute.xlu0 %1168
        %1170 = vrot.lane.b32.xlu0 %v895, 64
        %v1171 = vpop.permute.xlu0 %1170
        %1172 = vrot.lane.b32.xlu0 %v898, 64
        %v1173 = vpop.permute.xlu0 %1172
        %1174 = vrot.lane.b32.xlu0 %v900, 64
        %v1175 = vpop.permute.xlu0 %1174
        %1176 = vrot.lane.b32.xlu0 %v903, 64
        %v1177 = vpop.permute.xlu0 %1176
        %1178 = vrot.lane.b32.xlu0 %v905, 64
        %v1179 = vpop.permute.xlu0 %1178
        %v1228 = vrot.slane %v1085, 1
        %v1229 = vrot.slane %v1087, 1
        %v1230 = vrot.slane %v1089, 1
        %v1231 = vrot.slane %v1091, 1
        %v1232 = vrot.slane %v1093, 1
        %v1233 = vrot.slane %v1095, 1
        %v1234 = vrot.slane %v1097, 1
        %v1235 = vrot.slane %v1099, 1
        %v1236 = vrot.slane %v1101, 1
        %v1237 = vrot.slane %v1103, 1
        %v1238 = vrot.slane %v1105, 1
        %v1239 = vrot.slane %v1107, 1
        %v1240 = vrot.slane %v1109, 1
        %v1241 = vrot.slane %v1111, 1
        %v1242 = vrot.slane %v1113, 1
        %v1243 = vrot.slane %v1115, 1
        %v1244 = vrot.slane %v1117, 1
        %v1245 = vrot.slane %v1119, 1
        %v1246 = vrot.slane %v1121, 1
        %v1247 = vrot.slane %v1123, 1
        %v1248 = vrot.slane %v1125, 1
        %v1249 = vrot.slane %v1127, 1
        %v1250 = vrot.slane %v1129, 1
        %v1251 = vrot.slane %v1131, 1
        %v1252 = vrot.slane %v1133, 1
        %v1253 = vrot.slane %v1135, 1
        %v1254 = vrot.slane %v1137, 1
        %v1255 = vrot.slane %v1139, 1
        %v1256 = vrot.slane %v1141, 1
        %v1257 = vrot.slane %v1143, 1
        %v1258 = vrot.slane %v1145, 1
        %v1259 = vrot.slane %v1147, 1
        %v1260 = vrot.slane %v1149, 1
        %v1261 = vrot.slane %v1151, 1
        %v1262 = vrot.slane %v1153, 1
        %v1263 = vrot.slane %v1155, 1
        %v1264 = vrot.slane %v1157, 1
        %v1265 = vrot.slane %v1159, 1
        %v1266 = vrot.slane %v1161, 1
        %v1267 = vrot.slane %v1163, 1
        %v1268 = vrot.slane %v1165, 1
        %v1269 = vrot.slane %v1167, 1
        %v1270 = vrot.slane %v1169, 1
        %v1271 = vrot.slane %v1171, 1
        %v1272 = vrot.slane %v1173, 1
        %v1273 = vrot.slane %v1175, 1
        %v1274 = vrot.slane %v1177, 1
        %v1275 = vrot.slane %v1179, 1
        %v1276 = vlaneseq
        %v1277 = vshrl.u32 %v1276, 7
        %vm1278 = vcmp.lt.s32.totalorder %v1277, 7
        %v1279 = vsel %vm1278, %v1274, %v1275
        %v1280 = vsel %vm1278, %v1273, %v1274
        %v1281 = vsel %vm1278, %v1271, %v1272
        %v1282 = vsel %vm1278, %v1270, %v1271
        %v1283 = vsel %vm1278, %v1268, %v1269
        %v1284 = vsel %vm1278, %v1267, %v1268
        %v1285 = vsel %vm1278, %v1265, %v1266
        %v1286 = vsel %vm1278, %v1264, %v1265
        %v1287 = vsel %vm1278, %v1262, %v1263
        %v1288 = vsel %vm1278, %v1261, %v1262
        %v1289 = vsel %vm1278, %v1259, %v1260
        %v1290 = vsel %vm1278, %v1258, %v1259
        %v1291 = vsel %vm1278, %v1256, %v1257
        %v1292 = vsel %vm1278, %v1255, %v1256
        %v1293 = vsel %vm1278, %v1253, %v1254
        %v1294 = vsel %vm1278, %v1252, %v1253
        %v1295 = vsel %vm1278, %v1250, %v1251
        %v1296 = vsel %vm1278, %v1249, %v1250
        %v1297 = vsel %vm1278, %v1247, %v1248
        %v1298 = vsel %vm1278, %v1246, %v1247
        %v1299 = vsel %vm1278, %v1244, %v1245
        %v1300 = vsel %vm1278, %v1243, %v1244
        %v1301 = vsel %vm1278, %v1241, %v1242
        %v1302 = vsel %vm1278, %v1240, %v1241
        %v1303 = vsel %vm1278, %v1238, %v1239
        %v1304 = vsel %vm1278, %v1237, %v1238
        %v1305 = vsel %vm1278, %v1235, %v1236
        %v1306 = vsel %vm1278, %v1234, %v1235
        %v1307 = vsel %vm1278, %v1232, %v1233
        %v1308 = vsel %vm1278, %v1231, %v1232
        %v1309 = vsel %vm1278, %v1229, %v1230
        %v1310 = vsel %vm1278, %v1228, %v1229
        %v1311 = vadd.f32 %v788, %v1310
        %v1312 = vadd.f32 %v790, %v1309
        %v1313 = vadd.f32 %v795, %v1308
        %v1314 = vadd.f32 %v798, %v1307
        %v1315 = vadd.f32 %v803, %v1306
        %v1316 = vadd.f32 %v805, %v1305
        %v1317 = vadd.f32 %v810, %v1304
        %v1318 = vadd.f32 %v813, %v1303
        %v1319 = vadd.f32 %v818, %v1302
        %v1320 = vadd.f32 %v820, %v1301
        %v1321 = vadd.f32 %v825, %v1300
        %v1322 = vadd.f32 %v828, %v1299
        %v1323 = vadd.f32 %v833, %v1298
        %v1324 = vadd.f32 %v835, %v1297
        %v1325 = vadd.f32 %v840, %v1296
        %v1326 = vadd.f32 %v843, %v1295
        %v1327 = vadd.f32 %v848, %v1294
        %v1328 = vadd.f32 %v850, %v1293
        %v1329 = vadd.f32 %v855, %v1292
        %v1330 = vadd.f32 %v858, %v1291
        %v1331 = vadd.f32 %v863, %v1290
        %v1332 = vadd.f32 %v865, %v1289
        %v1333 = vadd.f32 %v870, %v1288
        %v1334 = vadd.f32 %v873, %v1287
        %v1335 = vadd.f32 %v878, %v1286
        %v1336 = vadd.f32 %v880, %v1285
        %v1337 = vadd.f32 %v885, %v1284
        %v1338 = vadd.f32 %v888, %v1283
        %v1339 = vadd.f32 %v893, %v1282
        %v1340 = vadd.f32 %v895, %v1281
        %v1341 = vadd.f32 %v900, %v1280
        %v1342 = vadd.f32 %v903, %v1279
        %v1343 = vrot.slane %v917, 2
        %v1344 = vrot.slane %v919, 2
        %v1345 = vrot.slane %v922, 2
        %v1346 = vrot.slane %v924, 2
        %v1347 = vrot.slane %v927, 2
        %v1348 = vrot.slane %v929, 2
        %v1349 = vrot.slane %v932, 2
        %v1350 = vrot.slane %v934, 2
        %v1351 = vrot.slane %v937, 2
        %v1352 = vrot.slane %v939, 2
        %v1353 = vrot.slane %v942, 2
        %v1354 = vrot.slane %v944, 2
        %v1355 = vrot.slane %v947, 2
        %v1356 = vrot.slane %v949, 2
        %v1357 = vrot.slane %v952, 2
        %v1358 = vrot.slane %v954, 2
        %v1359 = vrot.slane %v957, 2
        %v1360 = vrot.slane %v959, 2
        %v1361 = vrot.slane %v962, 2
        %v1362 = vrot.slane %v964, 2
        %v1363 = vrot.slane %v967, 2
        %v1364 = vrot.slane %v969, 2
        %v1365 = vrot.slane %v972, 2
        %v1366 = vrot.slane %v974, 2
        %v1367 = vrot.slane %v977, 2
        %v1368 = vrot.slane %v979, 2
        %v1369 = vrot.slane %v982, 2
        %v1370 = vrot.slane %v984, 2
        %v1371 = vrot.slane %v987, 2
        %v1372 = vrot.slane %v989, 2
        %v1373 = vrot.slane %v992, 2
        %v1374 = vrot.slane %v994, 2
        %v1375 = vrot.slane %v997, 2
        %v1376 = vrot.slane %v999, 2
        %v1377 = vrot.slane %v1002, 2
        %v1378 = vrot.slane %v1004, 2
        %v1379 = vrot.slane %v1007, 2
        %v1380 = vrot.slane %v1009, 2
        %v1381 = vrot.slane %v1012, 2
        %v1382 = vrot.slane %v1014, 2
        %v1383 = vrot.slane %v1017, 2
        %v1384 = vrot.slane %v1019, 2
        %v1385 = vrot.slane %v1022, 2
        %v1386 = vrot.slane %v1024, 2
        %v1387 = vrot.slane %v1027, 2
        %v1388 = vrot.slane %v1029, 2
        %v1389 = vrot.slane %v1032, 2
        %v1390 = vrot.slane %v1034, 2
        %vm1391 = vcmp.lt.s32.totalorder %v1277, 6
        %v1392 = vsel %vm1391, %v1389, %v1390
        %v1393 = vsel %vm1391, %v1388, %v1389
        %v1394 = vsel %vm1391, %v1386, %v1387
        %v1395 = vsel %vm1391, %v1385, %v1386
        %v1396 = vsel %vm1391, %v1383, %v1384
        %v1397 = vsel %vm1391, %v1382, %v1383
        %v1398 = vsel %vm1391, %v1380, %v1381
        %v1399 = vsel %vm1391, %v1379, %v1380
        %v1400 = vsel %vm1391, %v1377, %v1378
        %v1401 = vsel %vm1391, %v1376, %v1377
        %v1402 = vsel %vm1391, %v1374, %v1375
        %v1403 = vsel %vm1391, %v1373, %v1374
        %v1404 = vsel %vm1391, %v1371, %v1372
        %v1405 = vsel %vm1391, %v1370, %v1371
        %v1406 = vsel %vm1391, %v1368, %v1369
        %v1407 = vsel %vm1391, %v1367, %v1368
        %v1408 = vsel %vm1391, %v1365, %v1366
        %v1409 = vsel %vm1391, %v1364, %v1365
        %v1410 = vsel %vm1391, %v1362, %v1363
        %v1411 = vsel %vm1391, %v1361, %v1362
        %v1412 = vsel %vm1391, %v1359, %v1360
        %v1413 = vsel %vm1391, %v1358, %v1359
        %v1414 = vsel %vm1391, %v1356, %v1357
        %v1415 = vsel %vm1391, %v1355, %v1356
        %v1416 = vsel %vm1391, %v1353, %v1354
        %v1417 = vsel %vm1391, %v1352, %v1353
        %v1418 = vsel %vm1391, %v1350, %v1351
        %v1419 = vsel %vm1391, %v1349, %v1350
        %v1420 = vsel %vm1391, %v1347, %v1348
        %v1421 = vsel %vm1391, %v1346, %v1347
        %v1422 = vsel %vm1391, %v1344, %v1345
        %v1423 = vsel %vm1391, %v1343, %v1344
        %v1424 = vadd.f32 %v1311, %v1423
        %v1425 = vadd.f32 %v1312, %v1422
        %v1426 = vadd.f32 %v1313, %v1421
        %v1427 = vadd.f32 %v1314, %v1420
        %v1428 = vadd.f32 %v1315, %v1419
        %v1429 = vadd.f32 %v1316, %v1418
        %v1430 = vadd.f32 %v1317, %v1417
        %v1431 = vadd.f32 %v1318, %v1416
        %v1432 = vadd.f32 %v1319, %v1415
        %v1433 = vadd.f32 %v1320, %v1414
        %v1434 = vadd.f32 %v1321, %v1413
        %v1435 = vadd.f32 %v1322, %v1412
        %v1436 = vadd.f32 %v1323, %v1411
        %v1437 = vadd.f32 %v1324, %v1410
        %v1438 = vadd.f32 %v1325, %v1409
        %v1439 = vadd.f32 %v1326, %v1408
        %v1440 = vadd.f32 %v1327, %v1407
        %v1441 = vadd.f32 %v1328, %v1406
        %v1442 = vadd.f32 %v1329, %v1405
        %v1443 = vadd.f32 %v1330, %v1404
        %v1444 = vadd.f32 %v1331, %v1403
        %v1445 = vadd.f32 %v1332, %v1402
        %v1446 = vadd.f32 %v1333, %v1401
        %v1447 = vadd.f32 %v1334, %v1400
        %v1448 = vadd.f32 %v1335, %v1399
        %v1449 = vadd.f32 %v1336, %v1398
        %v1450 = vadd.f32 %v1337, %v1397
        %v1451 = vadd.f32 %v1338, %v1396
        %v1452 = vadd.f32 %v1339, %v1395
        %v1453 = vadd.f32 %v1340, %v1394
        %v1454 = vadd.f32 %v1341, %v1393
        %v1455 = vadd.f32 %v1342, %v1392
        %v1456 = vld [vmem:[%s2] sm:$0x1]
        %v1458 = vperm.slane %v1456, 0
        %v1460 = vmul.f32 %v1424, %v1458
        %v1461 = vmul.f32 %v1425, %v1458
        %v1462 = vmul.f32 %v1426, %v1458
        %v1463 = vmul.f32 %v1427, %v1458
        %v1464 = vmul.f32 %v1428, %v1458
        %v1465 = vmul.f32 %v1429, %v1458
        %v1466 = vmul.f32 %v1430, %v1458
        %v1467 = vmul.f32 %v1431, %v1458
        %v1468 = vmul.f32 %v1432, %v1458
        %v1469 = vmul.f32 %v1433, %v1458
        %v1470 = vmul.f32 %v1434, %v1458
        %v1471 = vmul.f32 %v1435, %v1458
        %v1472 = vmul.f32 %v1436, %v1458
        %v1473 = vmul.f32 %v1437, %v1458
        %v1474 = vmul.f32 %v1438, %v1458
        %v1475 = vmul.f32 %v1439, %v1458
        %v1476 = vmul.f32 %v1440, %v1458
        %v1477 = vmul.f32 %v1441, %v1458
        %v1478 = vmul.f32 %v1442, %v1458
        %v1479 = vmul.f32 %v1443, %v1458
        %v1480 = vmul.f32 %v1444, %v1458
        %v1481 = vmul.f32 %v1445, %v1458
        %v1482 = vmul.f32 %v1446, %v1458
        %v1483 = vmul.f32 %v1447, %v1458
        %v1484 = vmul.f32 %v1448, %v1458
        %v1485 = vmul.f32 %v1449, %v1458
        %v1486 = vmul.f32 %v1450, %v1458
        %v1487 = vmul.f32 %v1451, %v1458
        %v1488 = vmul.f32 %v1452, %v1458
        %v1489 = vmul.f32 %v1453, %v1458
        %v1490 = vmul.f32 %v1454, %v1458
        %v1491 = vmul.f32 %v1455, %v1458
        %v1492 = vld [vmem:[%s3] sm:$0x1]
        %v1494 = vperm.slane %v1492, 0
        %v1496 = vadd.f32 %v1460, %v1494
        %v1497 = vadd.f32 %v1461, %v1494
        %v1498 = vadd.f32 %v1462, %v1494
        %v1499 = vadd.f32 %v1463, %v1494
        %v1500 = vadd.f32 %v1464, %v1494
        %v1501 = vadd.f32 %v1465, %v1494
        %v1502 = vadd.f32 %v1466, %v1494
        %v1503 = vadd.f32 %v1467, %v1494
        %v1504 = vadd.f32 %v1468, %v1494
        %v1505 = vadd.f32 %v1469, %v1494
        %v1506 = vadd.f32 %v1470, %v1494
        %v1507 = vadd.f32 %v1471, %v1494
        %v1508 = vadd.f32 %v1472, %v1494
        %v1509 = vadd.f32 %v1473, %v1494
        %v1510 = vadd.f32 %v1474, %v1494
        %v1511 = vadd.f32 %v1475, %v1494
        %v1512 = vadd.f32 %v1476, %v1494
        %v1513 = vadd.f32 %v1477, %v1494
        %v1514 = vadd.f32 %v1478, %v1494
        %v1515 = vadd.f32 %v1479, %v1494
        %v1516 = vadd.f32 %v1480, %v1494
        %v1517 = vadd.f32 %v1481, %v1494
        %v1518 = vadd.f32 %v1482, %v1494
        %v1519 = vadd.f32 %v1483, %v1494
        %v1520 = vadd.f32 %v1484, %v1494
        %v1521 = vadd.f32 %v1485, %v1494
        %v1522 = vadd.f32 %v1486, %v1494
        %v1523 = vadd.f32 %v1487, %v1494
        %v1524 = vadd.f32 %v1488, %v1494
        %v1525 = vadd.f32 %v1489, %v1494
        %v1526 = vadd.f32 %v1490, %v1494
        %v1527 = vadd.f32 %v1491, %v1494
        %v1528 = vmax.f32 %v1496, 0.0
        %v1529 = vmax.f32 %v1497, 0.0
        %v1530 = vmax.f32 %v1498, 0.0
        %v1531 = vmax.f32 %v1499, 0.0
        %v1532 = vmax.f32 %v1500, 0.0
        %v1533 = vmax.f32 %v1501, 0.0
        %v1534 = vmax.f32 %v1502, 0.0
        %v1535 = vmax.f32 %v1503, 0.0
        %v1536 = vmax.f32 %v1504, 0.0
        %v1537 = vmax.f32 %v1505, 0.0
        %v1538 = vmax.f32 %v1506, 0.0
        %v1539 = vmax.f32 %v1507, 0.0
        %v1540 = vmax.f32 %v1508, 0.0
        %v1541 = vmax.f32 %v1509, 0.0
        %v1542 = vmax.f32 %v1510, 0.0
        %v1543 = vmax.f32 %v1511, 0.0
        %v1544 = vmax.f32 %v1512, 0.0
        %v1545 = vmax.f32 %v1513, 0.0
        %v1546 = vmax.f32 %v1514, 0.0
        %v1547 = vmax.f32 %v1515, 0.0
        %v1548 = vmax.f32 %v1516, 0.0
        %v1549 = vmax.f32 %v1517, 0.0
        %v1550 = vmax.f32 %v1518, 0.0
        %v1551 = vmax.f32 %v1519, 0.0
        %v1552 = vmax.f32 %v1520, 0.0
        %v1553 = vmax.f32 %v1521, 0.0
        %v1554 = vmax.f32 %v1522, 0.0
        %v1555 = vmax.f32 %v1523, 0.0
        %v1556 = vmax.f32 %v1524, 0.0
        %v1557 = vmax.f32 %v1525, 0.0
        %v1558 = vmax.f32 %v1526, 0.0
        %v1559 = vmax.f32 %v1527, 0.0
        %v1560 = vadd.f32 %v1528, %v1530
        %v1561 = vadd.f32 %v1529, %v1531
        %v1562 = vadd.f32 %v1532, %v1534
        %v1563 = vadd.f32 %v1533, %v1535
        %v1564 = vadd.f32 %v1536, %v1538
        %v1565 = vadd.f32 %v1537, %v1539
        %v1566 = vadd.f32 %v1540, %v1542
        %v1567 = vadd.f32 %v1541, %v1543
        %v1568 = vadd.f32 %v1544, %v1546
        %v1569 = vadd.f32 %v1545, %v1547
        %v1570 = vadd.f32 %v1548, %v1550
        %v1571 = vadd.f32 %v1549, %v1551
        %v1572 = vadd.f32 %v1552, %v1554
        %v1573 = vadd.f32 %v1553, %v1555
        %v1574 = vadd.f32 %v1556, %v1558
        %v1575 = vadd.f32 %v1557, %v1559
        %1576 = vst.msk [vmem:[#allocation2] sm:$0xff] %vm608, %v1560
        %1577 = vst.msk [vmem:[#allocation2 + $0x8] sm:$0xff] %vm608, %v1561
        %1578 = vst.msk [vmem:[#allocation2 + $0x10] sm:$0xff] %vm608, %v1562
        %1579 = vst.msk [vmem:[#allocation2 + $0x18] sm:$0xff] %vm608, %v1563
        %1580 = vst.msk [vmem:[#allocation2 + $0x20] sm:$0xff] %vm608, %v1564
        %1581 = vst.msk [vmem:[#allocation2 + $0x28] sm:$0xff] %vm608, %v1565
        %1582 = vst.msk [vmem:[#allocation2 + $0x30] sm:$0xff] %vm608, %v1566
        %1583 = vst.msk [vmem:[#allocation2 + $0x38] sm:$0xff] %vm608, %v1567
        %1584 = vst.msk [vmem:[#allocation2 + $0x40] sm:$0xff] %vm608, %v1568
        %1585 = vst.msk [vmem:[#allocation2 + $0x48] sm:$0xff] %vm608, %v1569
        %1586 = vst.msk [vmem:[#allocation2 + $0x50] sm:$0xff] %vm608, %v1570
        %1587 = vst.msk [vmem:[#allocation2 + $0x58] sm:$0xff] %vm608, %v1571
        %1588 = vst.msk [vmem:[#allocation2 + $0x60] sm:$0xff] %vm608, %v1572
        %1589 = vst.msk [vmem:[#allocation2 + $0x68] sm:$0xff] %vm608, %v1573
        %1590 = vst.msk [vmem:[#allocation2 + $0x70] sm:$0xff] %vm608, %v1574
        %1591 = vst.msk [vmem:[#allocation2 + $0x78] sm:$0xff] %vm608, %v1575
        %v1592 = vld [vmem:[#allocation2] ss:$2 sm:$0xff]
        %s1593 = scalar_lea.vmem [#allocation2], 16
        %v1594 = vld [vmem:[%s1593] ss:$2 sm:$0xff]
        %s1595 = scalar_lea.vmem [#allocation2], 32
        %v1596 = vld [vmem:[%s1595] ss:$2 sm:$0xff]
        %s1597 = scalar_lea.vmem [#allocation2], 48
        %v1598 = vld [vmem:[%s1597] ss:$2 sm:$0xff]
        %s1599 = scalar_lea.vmem [#allocation2], 64
        %v1600 = vld [vmem:[%s1599] ss:$2 sm:$0xff]
        %s1601 = scalar_lea.vmem [#allocation2], 80
        %v1602 = vld [vmem:[%s1601] ss:$2 sm:$0xff]
        %s1603 = scalar_lea.vmem [#allocation2], 96
        %v1604 = vld [vmem:[%s1603] ss:$2 sm:$0xff]
        %s1605 = scalar_lea.vmem [#allocation2], 112
        %v1606 = vld [vmem:[%s1605] ss:$2 sm:$0xff]
        %s1607 = scalar_lea.vmem [#allocation2], 1
        %v1608 = vld [vmem:[%s1607] ss:$2 sm:$0xff]
        %s1609 = scalar_lea.vmem [#allocation2], 17
        %v1610 = vld [vmem:[%s1609] ss:$2 sm:$0xff]
        %s1611 = scalar_lea.vmem [#allocation2], 33
        %v1612 = vld [vmem:[%s1611] ss:$2 sm:$0xff]
        %s1613 = scalar_lea.vmem [#allocation2], 49
        %v1614 = vld [vmem:[%s1613] ss:$2 sm:$0xff]
        %s1615 = scalar_lea.vmem [#allocation2], 65
        %v1616 = vld [vmem:[%s1615] ss:$2 sm:$0xff]
        %s1617 = scalar_lea.vmem [#allocation2], 81
        %v1618 = vld [vmem:[%s1617] ss:$2 sm:$0xff]
        %s1619 = scalar_lea.vmem [#allocation2], 97
        %v1620 = vld [vmem:[%s1619] ss:$2 sm:$0xff]
        %s1621 = scalar_lea.vmem [#allocation2], 113
        %v1622 = vld [vmem:[%s1621] ss:$2 sm:$0xff]
        %v1623 = vadd.f32 %v1592, %v1608
        %v1624 = vadd.f32 %v1594, %v1610
        %v1625 = vadd.f32 %v1596, %v1612
        %v1626 = vadd.f32 %v1598, %v1614
        %v1627 = vadd.f32 %v1600, %v1616
        %v1628 = vadd.f32 %v1602, %v1618
        %v1629 = vadd.f32 %v1604, %v1620
        %v1630 = vadd.f32 %v1606, %v1622
        %v1631 = vmul.f32 %v1623, 0.25
        %v1632 = vmul.f32 %v1624, 0.25
        %v1633 = vmul.f32 %v1625, 0.25
        %v1634 = vmul.f32 %v1626, 0.25
        %v1635 = vmul.f32 %v1627, 0.25
        %v1636 = vmul.f32 %v1628, 0.25
        %v1637 = vmul.f32 %v1629, 0.25
        %v1638 = vmul.f32 %v1630, 0.25
        %1639 = vst.msk [vmem:[%s214] sm:$0xff] %vm608, %v1631
        %1640 = vst.msk [vmem:[%s214 + $0x8] sm:$0xff] %vm608, %v1632
        %1641 = vst.msk [vmem:[%s214 + $0x10] sm:$0xff] %vm608, %v1633
        %1642 = vst.msk [vmem:[%s214 + $0x18] sm:$0xff] %vm608, %v1634
        %1643 = vst.msk [vmem:[%s214 + $0x20] sm:$0xff] %vm608, %v1635
        %1644 = vst.msk [vmem:[%s214 + $0x28] sm:$0xff] %vm608, %v1636
        %1645 = vst.msk [vmem:[%s214 + $0x30] sm:$0xff] %vm608, %v1637
        %1646 = vst.msk [vmem:[%s214 + $0x38] sm:$0xff] %vm608, %v1638
        %s1647 = sand.u32 %s131, 1
        %s1648 = scalar_lea.sflag [#allocation4], %s1647
        %s1649 = sand.u32 %s131, 1
        %s1650 = smul.addr %s1649, 64
        %s1651 = scalar_lea.vmem [#allocation3], %s1650
        // Predicated region
        $region37: #{downblock2d_forward.3} parent=35 // pred_check
          %p1652 = pneg %p141
        $region38: #{downblock2d_forward.3} parent=35 // pred_check_branch
          %1654 = sbr.rel (%p1652) target = $region40
        $region39: #{downblock2d_forward.3} parent=35 // pred_region
          %s1655 = smul.u32 8, %s23
          %1657 = vsyncadd %s1648, 0
          %s1658 = smul.addr %s22, 8
          %s1659 = sadd.s32 %s1655, %s1658
          %s1660 = smul.addr %s1659, 8
          %s1661 = scalar_lea.hbm %s4, %s1660
          %s1662 = sshll.u32 %s1651, 4
          %s1663 = int_to_ptr.vmem [resolvable:$true] %s1662
          %s1664 = sshll.u32 %s1661, 4
          %s1665 = int_to_ptr.hbm [resolvable:$true] %s1664
          %1670 = dma.vmem_to_hbm [thread:$0]  %s1663, 1024, %s1665, %s1648, 128, 128, 8
        $region40: #{downblock2d_forward.3} parent=35 // pred_fallthru
          _
      $region36: #{downblock2d_forward.3} parent=5 // pred_fallthru
        _
      %p1671 = scmp.le.s32.totalorder 2, %s13
      // Predicated region
      $region41: #{downblock2d_forward.3} parent=5 // pred_check
        %p1672 = pneg %p1671
      $region42: #{downblock2d_forward.3} parent=5 // pred_check_branch
        %1674 = sbr.rel (%p1672) target = $region44
      $region43: #{downblock2d_forward.3} parent=5 // pred_region
        %s1675 = ssub.s32 %s13, 2
        // Predicated region
        $region45: #{downblock2d_forward.3} parent=43 // pred_check
          %p1676 = pneg %p147
        $region46: #{downblock2d_forward.3} parent=43 // pred_check_branch
          %1678 = sbr.rel (%p1676) target = $region48
        $region47: #{downblock2d_forward.3} parent=43 // pred_region
          %s1679 = sand.u32 %s132, 1
          %s1680 = scalar_lea.sflag [#allocation4], %s1679
          %s1681 = sand.u32 %s132, 1
          %s1682 = smul.addr %s1681, 64
          %s1683 = scalar_lea.vmem [#allocation3], %s1682
          %1685 = dma.done %s1680, 1024
        $region48: #{downblock2d_forward.3} parent=43 // pred_fallthru
          _
      $region44: #{downblock2d_forward.3} parent=5 // pred_fallthru
        _
    $region6: #{downblock2d_forward.3} parent=1 // loop_footer
      %s17 = sadd.s32 1, %s13
    $region7: #{downblock2d_forward.3} parent=1 // loop_footer_branch
      %12 = sbr.rel target = $region3
    $region8: #{downblock2d_forward.3} parent=1 // loop_exit
      _
    %1686 = vsyncpa [#allocation4], 1
    %s1687 = scalar_lea.sflag [#allocation4], 1
    %1688 = vsyncpa %s1687, 1

</llo_original>
